<compile_context>
chip_gen: v7x
topology: tpu7x:2x2x1
jax: 0.10.0
libtpu: 0.0.40
codegen_flags: <defaults>
</compile_context>

<pallas_src>
import jax
import jax.numpy as jnp
from jax.experimental import pallas as pl
from jax.experimental.pallas import tpu as pltpu

# ----------------------------- shapes -------------------------------------
B, C, H, W = 2, 3, 16, 16
IMG_FLAT = C * H * W            # 768  (== ViT-B/16 hidden dim, used as stub feature)
VIT_OUT = 128                   # replacement ViT head output
GAIT_HID = 128                  # gait_fc output
FC1_IN, FC1_OUT = 256, 256
FC2_OUT, FC3_OUT, FC4_OUT = 128, 64, 1
OUT_ROWS = 8                    # sublane-padded fc4 output rows (row 0 is real)

MAX_TB = 512                    # max batch-tile rows per grid step


def _round_up(x, m):
    return ((x + m - 1) // m) * m


# ----------------------------- kernel --------------------------------------
def ensemble_kernel(img1_ref, img2_ref,       # [TB,768] bf16 each
                    wg_ref, bg_ref,           # gait_fc:  [1,128], [1,128]       f32
                    wh_ref, bh_ref,           # vit head: [768,128] bf16, [1,128] f32
                    w1g_ref, w1v_ref, b1_ref, # fc1 split: [128,256] bf16 x2, [1,256] f32
                    w2_ref, b2_ref,           # fc2: [256,128] bf16, [1,128] f32
                    w3_ref, b3_ref,           # fc3: [128,64]  bf16, [1,64]  f32
                    w4_ref, b4_ref,           # fc4 (row-padded): [8,64] bf16, [1,1] f32
                    out_ref):                 # [8, TB] f32 (only row 0 meaningful)
    img1 = img1_ref[...]                      # [TB, 768] bf16
    img2 = img2_ref[...]                      # [TB, 768] bf16

    # --- gait branch (VPU/XLU, f32 elementwise per v5e guidance) -------------
    # TODO(synk): GaitModel body not provided; stubbed as per-sample MSE score.
    diff = img1.astype(jnp.float32) - img2.astype(jnp.float32)
    gait_score = jnp.mean(diff * diff, axis=-1, keepdims=True)            # [TB, 1]
    # gait_fc is Linear(1,128): a K=1 matmul == broadcasted scale + bias (VPU).
    gait_feat = jnp.maximum(gait_score * wg_ref[...] + bg_ref[...], 0.0)  # [TB,128]

    # --- ViT branch (bf16 MXU straight off the bf16 image, f32 accumulate) ---
    # TODO(synk): vit_b_16 backbone + Resize(224) transform not translatable;
    # flattened image (768-d) stands in for the backbone's 768-d feature.
    vit_feat = jnp.dot(img1, wh_ref[...],
                       preferred_element_type=jnp.float32) + bh_ref[...]  # [TB,128]

    # --- fc1 as two accumulating matmuls == fc1(concat(gait, vit)) ------------
    # torch.cat((gait_output, vit_output), dim=1): gait hits w1[:128], vit w1[128:].
    x = jnp.maximum(
        jnp.dot(gait_feat.astype(jnp.bfloat16), w1g_ref[...],
                preferred_element_type=jnp.float32)
        + jnp.dot(vit_feat.astype(jnp.bfloat16), w1v_ref[...],
                  preferred_element_type=jnp.float32)
        + b1_ref[...], 0.0)                                                # [TB,256]
    # dropout (p=0.5) in eval mode: identity.
    x = jnp.maximum(jnp.dot(x.astype(jnp.bfloat16), w2_ref[...],
                            preferred_element_type=jnp.float32)
                    + b2_ref[...], 0.0)                                    # [TB,128]
    # dropout (p=0.5) in eval mode: identity.
    x = jnp.maximum(jnp.dot(x.astype(jnp.bfloat16), w3_ref[...],
                            preferred_element_type=jnp.float32)
                    + b3_ref[...], 0.0)                                    # [TB,64]
    # fc4: contract over the 64 features with the batch on the LANE axis of the
    # result -> lane-dense [8, TB] store (row 0 real, rows 1-7 from zero-pad).
    out_ref[...] = (jnp.einsum('ok,bk->ob', w4_ref[...], x.astype(jnp.bfloat16),
                               preferred_element_type=jnp.float32)
                    + b4_ref[...])                                         # [8, TB]


# ----------------------------- wrapper --------------------------------------
def ensemble_forward(img1, img2, params):
    batch = img1.shape[0]
    # flatten NCHW -> [B, C*H*W] (row-major, matches torch .view semantics);
    # bf16 ingest halves the dominant HBM read traffic (kernel is mem-bound).
    i1 = img1.reshape(batch, -1).astype(jnp.bfloat16)
    i2 = img2.reshape(batch, -1).astype(jnp.bfloat16)

    rows8 = _round_up(batch, 8)
    if rows8 < 256:
        # small batch: single grid step, blocks cover the full arrays.
        tb = rows8
    else:
        # tile is a multiple of 128 lanes (lane-dense transposed output) and the
        # grid has >= 2 steps so v7x's two TensorCores both get work.
        tb = min(MAX_TB, max(128, (rows8 // 2) // 128 * 128))
    b_pad = _round_up(rows8, tb)
    if b_pad != batch:
        pad = b_pad - batch
        i1 = jnp.pad(i1, ((0, pad), (0, 0)))
        i2 = jnp.pad(i2, ((0, pad), (0, 0)))

    # bf16 for all MXU operands (f32 accumulation kept in the kernel).
    wh = params["wh"].astype(jnp.bfloat16)
    w1g = params["w1"][:GAIT_HID, :].astype(jnp.bfloat16)   # gait half of fc1
    w1v = params["w1"][GAIT_HID:, :].astype(jnp.bfloat16)   # vit half of fc1
    w2 = params["w2"].astype(jnp.bfloat16)
    w3 = params["w3"].astype(jnp.bfloat16)
    # fc4 weight as a sublane-padded row block [8, 64]; only row 0 is real.
    w4r = jnp.zeros((OUT_ROWS, FC3_OUT), jnp.float32)
    w4r = w4r.at[0:1, :].set(params["w4"].T).astype(jnp.bfloat16)

    weight_args = (params["wg"], params["bg"], wh, params["bh"],
                   w1g, w1v, params["b1"],
                   w2, params["b2"],
                   params["w3"].astype(jnp.bfloat16) if False else w3, params["b3"],
                   w4r, params["b4"])
    args = (i1, i2) + weight_args

    # weights/biases: constant block index -> stay VMEM-resident across grid steps.
    def const_spec(a):
        return pl.BlockSpec(a.shape, lambda i: (0, 0))

    in_specs = [
        pl.BlockSpec((tb, IMG_FLAT), lambda i: (i, 0)),
        pl.BlockSpec((tb, IMG_FLAT), lambda i: (i, 0)),
    ] + [const_spec(a) for a in weight_args]

    out = pl.pallas_call(
        ensemble_kernel,
        out_shape=jax.ShapeDtypeStruct((OUT_ROWS, b_pad), jnp.float32),
        grid=(b_pad // tb,),
        in_specs=in_specs,
        out_specs=pl.BlockSpec((OUT_ROWS, tb), lambda i: (0, i)),
        compiler_params=pltpu.CompilerParams(
            dimension_semantics=("parallel",)),
    )(*args)
    # row 0 holds the real fc4 output, batch is on the lane axis.
    return out[0, :batch].reshape(batch, FC4_OUT)


# ----------------------------- params ---------------------------------------
def _linear_init(key, fan_in, fan_out):
    """PyTorch nn.Linear default: U(-1/sqrt(fan_in), 1/sqrt(fan_in)).
    Weight stored as [fan_in, fan_out] (transposed vs torch) for x @ W."""
    kw, kb = jax.random.split(key)
    bound = 1.0 / (fan_in ** 0.5)
    w = jax.random.uniform(kw, (fan_in, fan_out), jnp.float32, -bound, bound)
    b = jax.random.uniform(kb, (1, fan_out), jnp.float32, -bound, bound)
    return w, b


def make_params(key):
    ks = jax.random.split(key, 6)
    wg, bg = _linear_init(ks[0], 1, GAIT_HID)          # gait_fc
    wh, bh = _linear_init(ks[1], IMG_FLAT, VIT_OUT)    # vit heads replacement
    w1, b1 = _linear_init(ks[2], FC1_IN, FC1_OUT)      # fc1
    w2, b2 = _linear_init(ks[3], FC1_OUT, FC2_OUT)     # fc2
    w3, b3 = _linear_init(ks[4], FC2_OUT, FC3_OUT)     # fc3
    w4, b4 = _linear_init(ks[5], FC3_OUT, FC4_OUT)     # fc4
    return dict(wg=wg, bg=bg, wh=wh, bh=bh,
                w1=w1, b1=b1, w2=w2, b2=b2,
                w3=w3, b3=b3, w4=w4, b4=b4)


# ----------------------------- main ------------------------------------------
if __name__ == "__main__":
    key = jax.random.PRNGKey(0)
    k_img1, k_img2, k_params = jax.random.split(key, 3)

    img1 = jax.random.normal(k_img1, (B, C, H, W), jnp.float32)  # NCHW
    img2 = jax.random.normal(k_img2, (B, C, H, W), jnp.float32)  # NCHW
    params = make_params(k_params)

    out = ensemble_forward(img1, img2, params)
    jax.block_until_ready(out)
    assert out.shape == (B, 1), out.shape
    assert bool(jnp.all(jnp.isfinite(out)))
    print("KERNEL_OK")
</pallas_src>

<mosaic_0001>
module attributes {stable_mosaic.version = 11 : i64} {
  func.func @ensemble_kernel(%arg0: i32, %arg1: memref<8x768xbf16, #tpu.memory_space<vmem>>, %arg2: memref<8x768xbf16, #tpu.memory_space<vmem>>, %arg3: memref<1x128xf32, #tpu.memory_space<vmem>>, %arg4: memref<1x128xf32, #tpu.memory_space<vmem>>, %arg5: memref<768x128xbf16, #tpu.memory_space<vmem>>, %arg6: memref<1x128xf32, #tpu.memory_space<vmem>>, %arg7: memref<128x256xbf16, #tpu.memory_space<vmem>>, %arg8: memref<128x256xbf16, #tpu.memory_space<vmem>>, %arg9: memref<1x256xf32, #tpu.memory_space<vmem>>, %arg10: memref<256x128xbf16, #tpu.memory_space<vmem>>, %arg11: memref<1x128xf32, #tpu.memory_space<vmem>>, %arg12: memref<128x64xbf16, #tpu.memory_space<vmem>>, %arg13: memref<1x64xf32, #tpu.memory_space<vmem>>, %arg14: memref<8x64xbf16, #tpu.memory_space<vmem>>, %arg15: memref<1x1xf32, #tpu.memory_space<vmem>>, %arg16: memref<8x8xf32, #tpu.memory_space<vmem>>) attributes {dimension_semantics = [#tpu.dimension_semantics<parallel>], iteration_bounds = array<i64: 1>, scalar_prefetch = 0 : i64, scratch_operands = 0 : i64, tpu.core_type = #tpu.core_type<tc>, window_params = [{transform_indices = @transform_0, window_bounds = array<i64: 8, 768>}, {transform_indices = @transform_1, window_bounds = array<i64: 8, 768>}, {pipeline_mode = #tpu.pipeline_mode<synchronous>, transform_indices = @transform_2, window_bounds = array<i64: 1, 128>}, {pipeline_mode = #tpu.pipeline_mode<synchronous>, transform_indices = @transform_3, window_bounds = array<i64: 1, 128>}, {pipeline_mode = #tpu.pipeline_mode<synchronous>, transform_indices = @transform_4, window_bounds = array<i64: 768, 128>}, {pipeline_mode = #tpu.pipeline_mode<synchronous>, transform_indices = @transform_5, window_bounds = array<i64: 1, 128>}, {pipeline_mode = #tpu.pipeline_mode<synchronous>, transform_indices = @transform_6, window_bounds = array<i64: 128, 256>}, {pipeline_mode = #tpu.pipeline_mode<synchronous>, transform_indices = @transform_7, window_bounds = array<i64: 128, 256>}, {pipeline_mode = #tpu.pipeline_mode<synchronous>, transform_indices = @transform_8, window_bounds = array<i64: 1, 256>}, {pipeline_mode = #tpu.pipeline_mode<synchronous>, transform_indices = @transform_9, window_bounds = array<i64: 256, 128>}, {pipeline_mode = #tpu.pipeline_mode<synchronous>, transform_indices = @transform_10, window_bounds = array<i64: 1, 128>}, {pipeline_mode = #tpu.pipeline_mode<synchronous>, transform_indices = @transform_11, window_bounds = array<i64: 128, 64>}, {pipeline_mode = #tpu.pipeline_mode<synchronous>, transform_indices = @transform_12, window_bounds = array<i64: 1, 64>}, {pipeline_mode = #tpu.pipeline_mode<synchronous>, transform_indices = @transform_13, window_bounds = array<i64: 8, 64>}, {pipeline_mode = #tpu.pipeline_mode<synchronous>, transform_indices = @transform_14, window_bounds = array<i64: 1, 1>}, {transform_indices = @transform_15, window_bounds = array<i64: 8, 8>}]} {
    %c0 = arith.constant 0 : index
    %c0_0 = arith.constant 0 : index
    %0 = vector.load %arg1[%c0, %c0_0] : memref<8x768xbf16, #tpu.memory_space<vmem>>, vector<8x768xbf16>
    %c0_1 = arith.constant 0 : index
    %c0_2 = arith.constant 0 : index
    %1 = vector.load %arg2[%c0_1, %c0_2] : memref<8x768xbf16, #tpu.memory_space<vmem>>, vector<8x768xbf16>
    %2 = arith.extf %0 : vector<8x768xbf16> to vector<8x768xf32>
    %3 = arith.extf %1 : vector<8x768xbf16> to vector<8x768xf32>
    %4 = arith.subf %2, %3 : vector<8x768xf32>
    %5 = arith.mulf %4, %4 : vector<8x768xf32>
    %cst = arith.constant dense<0.000000e+00> : vector<8xf32>
    %6 = vector.multi_reduction <add>, %5, %cst [1] : vector<8x768xf32> to vector<8xf32>
    %7 = vector.shape_cast %6 : vector<8xf32> to vector<8x1xf32>
    %cst_3 = arith.constant 7.680000e+02 : f32
    %8 = vector.broadcast %cst_3 : f32 to vector<8x1xf32>
    %9 = arith.divf %7, %8 : vector<8x1xf32>
    %c0_4 = arith.constant 0 : index
    %c0_5 = arith.constant 0 : index
    %10 = vector.load %arg3[%c0_4, %c0_5] : memref<1x128xf32, #tpu.memory_space<vmem>>, vector<1x128xf32>
    %11 = vector.broadcast %9 : vector<8x1xf32> to vector<8x128xf32>
    %12 = vector.broadcast %10 : vector<1x128xf32> to vector<8x128xf32>
    %13 = arith.mulf %11, %12 : vector<8x128xf32>
    %c0_6 = arith.constant 0 : index
    %c0_7 = arith.constant 0 : index
    %14 = vector.load %arg4[%c0_6, %c0_7] : memref<1x128xf32, #tpu.memory_space<vmem>>, vector<1x128xf32>
    %15 = vector.broadcast %14 : vector<1x128xf32> to vector<8x128xf32>
    %16 = arith.addf %13, %15 : vector<8x128xf32>
    %cst_8 = arith.constant 0.000000e+00 : f32
    %17 = vector.broadcast %cst_8 : f32 to vector<8x128xf32>
    %18 = arith.maximumf %16, %17 : vector<8x128xf32>
    %c0_9 = arith.constant 0 : index
    %c0_10 = arith.constant 0 : index
    %19 = vector.load %arg5[%c0_9, %c0_10] : memref<768x128xbf16, #tpu.memory_space<vmem>>, vector<768x128xbf16>
    %cst_11 = arith.constant dense<0.000000e+00> : vector<8x128xf32>
    %20 = tpu.matmul %0, %19, %cst_11 {dimension_numbers = #tpu.dot_dimension_numbers<[1], [0], [0], [1], [0, 0, 1, 1], [], []>} : vector<8x768xbf16>, vector<768x128xbf16>, vector<8x128xf32> -> vector<8x128xf32>
    %c0_12 = arith.constant 0 : index
    %c0_13 = arith.constant 0 : index
    %21 = vector.load %arg6[%c0_12, %c0_13] : memref<1x128xf32, #tpu.memory_space<vmem>>, vector<1x128xf32>
    %22 = vector.broadcast %21 : vector<1x128xf32> to vector<8x128xf32>
    %23 = arith.addf %20, %22 : vector<8x128xf32>
    %24 = arith.truncf %18 : vector<8x128xf32> to vector<8x128xbf16>
    %c0_14 = arith.constant 0 : index
    %c0_15 = arith.constant 0 : index
    %25 = vector.load %arg7[%c0_14, %c0_15] : memref<128x256xbf16, #tpu.memory_space<vmem>>, vector<128x256xbf16>
    %cst_16 = arith.constant dense<0.000000e+00> : vector<8x256xf32>
    %26 = tpu.matmul %24, %25, %cst_16 {dimension_numbers = #tpu.dot_dimension_numbers<[1], [0], [0], [1], [0, 0, 1, 1], [], []>} : vector<8x128xbf16>, vector<128x256xbf16>, vector<8x256xf32> -> vector<8x256xf32>
    %27 = arith.truncf %23 : vector<8x128xf32> to vector<8x128xbf16>
    %c0_17 = arith.constant 0 : index
    %c0_18 = arith.constant 0 : index
    %28 = vector.load %arg8[%c0_17, %c0_18] : memref<128x256xbf16, #tpu.memory_space<vmem>>, vector<128x256xbf16>
    %cst_19 = arith.constant dense<0.000000e+00> : vector<8x256xf32>
    %29 = tpu.matmul %27, %28, %cst_19 {dimension_numbers = #tpu.dot_dimension_numbers<[1], [0], [0], [1], [0, 0, 1, 1], [], []>} : vector<8x128xbf16>, vector<128x256xbf16>, vector<8x256xf32> -> vector<8x256xf32>
    %30 = arith.addf %26, %29 : vector<8x256xf32>
    %c0_20 = arith.constant 0 : index
    %c0_21 = arith.constant 0 : index
    %31 = vector.load %arg9[%c0_20, %c0_21] : memref<1x256xf32, #tpu.memory_space<vmem>>, vector<1x256xf32>
    %32 = vector.broadcast %31 : vector<1x256xf32> to vector<8x256xf32>
    %33 = arith.addf %30, %32 : vector<8x256xf32>
    %cst_22 = arith.constant 0.000000e+00 : f32
    %34 = vector.broadcast %cst_22 : f32 to vector<8x256xf32>
    %35 = arith.maximumf %33, %34 : vector<8x256xf32>
    %36 = arith.truncf %35 : vector<8x256xf32> to vector<8x256xbf16>
    %c0_23 = arith.constant 0 : index
    %c0_24 = arith.constant 0 : index
    %37 = vector.load %arg10[%c0_23, %c0_24] : memref<256x128xbf16, #tpu.memory_space<vmem>>, vector<256x128xbf16>
    %cst_25 = arith.constant dense<0.000000e+00> : vector<8x128xf32>
    %38 = tpu.matmul %36, %37, %cst_25 {dimension_numbers = #tpu.dot_dimension_numbers<[1], [0], [0], [1], [0, 0, 1, 1], [], []>} : vector<8x256xbf16>, vector<256x128xbf16>, vector<8x128xf32> -> vector<8x128xf32>
    %c0_26 = arith.constant 0 : index
    %c0_27 = arith.constant 0 : index
    %39 = vector.load %arg11[%c0_26, %c0_27] : memref<1x128xf32, #tpu.memory_space<vmem>>, vector<1x128xf32>
    %40 = vector.broadcast %39 : vector<1x128xf32> to vector<8x128xf32>
    %41 = arith.addf %38, %40 : vector<8x128xf32>
    %cst_28 = arith.constant 0.000000e+00 : f32
    %42 = vector.broadcast %cst_28 : f32 to vector<8x128xf32>
    %43 = arith.maximumf %41, %42 : vector<8x128xf32>
    %44 = arith.truncf %43 : vector<8x128xf32> to vector<8x128xbf16>
    %c0_29 = arith.constant 0 : index
    %c0_30 = arith.constant 0 : index
    %45 = vector.load %arg12[%c0_29, %c0_30] : memref<128x64xbf16, #tpu.memory_space<vmem>>, vector<128x64xbf16>
    %cst_31 = arith.constant dense<0.000000e+00> : vector<8x64xf32>
    %46 = tpu.matmul %44, %45, %cst_31 {dimension_numbers = #tpu.dot_dimension_numbers<[1], [0], [0], [1], [0, 0, 1, 1], [], []>} : vector<8x128xbf16>, vector<128x64xbf16>, vector<8x64xf32> -> vector<8x64xf32>
    %c0_32 = arith.constant 0 : index
    %c0_33 = arith.constant 0 : index
    %47 = vector.load %arg13[%c0_32, %c0_33] : memref<1x64xf32, #tpu.memory_space<vmem>>, vector<1x64xf32>
    %48 = vector.broadcast %47 : vector<1x64xf32> to vector<8x64xf32>
    %49 = arith.addf %46, %48 : vector<8x64xf32>
    %cst_34 = arith.constant 0.000000e+00 : f32
    %50 = vector.broadcast %cst_34 : f32 to vector<8x64xf32>
    %51 = arith.maximumf %49, %50 : vector<8x64xf32>
    %c0_35 = arith.constant 0 : index
    %c0_36 = arith.constant 0 : index
    %52 = vector.load %arg14[%c0_35, %c0_36] : memref<8x64xbf16, #tpu.memory_space<vmem>>, vector<8x64xbf16>
    %53 = arith.truncf %51 : vector<8x64xf32> to vector<8x64xbf16>
    "tpu.trace_start"() <{level = 10 : i32, message = "ok,bk->ob"}> : () -> ()
    %cst_37 = arith.constant dense<0.000000e+00> : vector<8x8xf32>
    %54 = tpu.matmul %52, %53, %cst_37 {dimension_numbers = #tpu.dot_dimension_numbers<[1], [1], [0], [0], [0, 0, 1, 0], [], []>} : vector<8x64xbf16>, vector<8x64xbf16>, vector<8x8xf32> -> vector<8x8xf32>
    "tpu.trace_stop"() : () -> ()
    %c0_38 = arith.constant 0 : index
    %c0_39 = arith.constant 0 : index
    %55 = vector.load %arg15[%c0_38, %c0_39] : memref<1x1xf32, #tpu.memory_space<vmem>>, vector<1x1xf32>
    %56 = vector.broadcast %55 : vector<1x1xf32> to vector<8x8xf32>
    %57 = arith.addf %54, %56 : vector<8x8xf32>
    %c0_40 = arith.constant 0 : index
    %c0_41 = arith.constant 0 : index
    %58 = vector.load %arg16[%c0_40, %c0_41] : memref<8x8xf32, #tpu.memory_space<vmem>>, vector<8x8xf32>
    tpu.vector_store %arg16[%c0_40, %c0_41], %57 {strides = array<i32>} : memref<8x8xf32, #tpu.memory_space<vmem>>, vector<8x8xf32>,
    return
  }
  func.func @transform_0(%arg0: i32) -> (i32, i32) {
    %c0_i32 = arith.constant 0 : i32
    %c0_i32_0 = arith.constant 0 : i32
    return %arg0, %c0_i32 : i32, i32
  }
  func.func @transform_1(%arg0: i32) -> (i32, i32) {
    %c0_i32 = arith.constant 0 : i32
    %c0_i32_0 = arith.constant 0 : i32
    return %arg0, %c0_i32 : i32, i32
  }
  func.func @transform_2(%arg0: i32) -> (i32, i32) {
    %c0_i32 = arith.constant 0 : i32
    %c0_i32_0 = arith.constant 0 : i32
    %c0_i32_1 = arith.constant 0 : i32
    return %c0_i32, %c0_i32_0 : i32, i32
  }
  func.func @transform_3(%arg0: i32) -> (i32, i32) {
    %c0_i32 = arith.constant 0 : i32
    %c0_i32_0 = arith.constant 0 : i32
    %c0_i32_1 = arith.constant 0 : i32
    return %c0_i32, %c0_i32_0 : i32, i32
  }
  func.func @transform_4(%arg0: i32) -> (i32, i32) {
    %c0_i32 = arith.constant 0 : i32
    %c0_i32_0 = arith.constant 0 : i32
    %c0_i32_1 = arith.constant 0 : i32
    return %c0_i32, %c0_i32_0 : i32, i32
  }
  func.func @transform_5(%arg0: i32) -> (i32, i32) {
    %c0_i32 = arith.constant 0 : i32
    %c0_i32_0 = arith.constant 0 : i32
    %c0_i32_1 = arith.constant 0 : i32
    return %c0_i32, %c0_i32_0 : i32, i32
  }
  func.func @transform_6(%arg0: i32) -> (i32, i32) {
    %c0_i32 = arith.constant 0 : i32
    %c0_i32_0 = arith.constant 0 : i32
    %c0_i32_1 = arith.constant 0 : i32
    return %c0_i32, %c0_i32_0 : i32, i32
  }
  func.func @transform_7(%arg0: i32) -> (i32, i32) {
    %c0_i32 = arith.constant 0 : i32
    %c0_i32_0 = arith.constant 0 : i32
    %c0_i32_1 = arith.constant 0 : i32
    return %c0_i32, %c0_i32_0 : i32, i32
  }
  func.func @transform_8(%arg0: i32) -> (i32, i32) {
    %c0_i32 = arith.constant 0 : i32
    %c0_i32_0 = arith.constant 0 : i32
    %c0_i32_1 = arith.constant 0 : i32
    return %c0_i32, %c0_i32_0 : i32, i32
  }
  func.func @transform_9(%arg0: i32) -> (i32, i32) {
    %c0_i32 = arith.constant 0 : i32
    %c0_i32_0 = arith.constant 0 : i32
    %c0_i32_1 = arith.constant 0 : i32
    return %c0_i32, %c0_i32_0 : i32, i32
  }
  func.func @transform_10(%arg0: i32) -> (i32, i32) {
    %c0_i32 = arith.constant 0 : i32
    %c0_i32_0 = arith.constant 0 : i32
    %c0_i32_1 = arith.constant 0 : i32
    return %c0_i32, %c0_i32_0 : i32, i32
  }
  func.func @transform_11(%arg0: i32) -> (i32, i32) {
    %c0_i32 = arith.constant 0 : i32
    %c0_i32_0 = arith.constant 0 : i32
    %c0_i32_1 = arith.constant 0 : i32
    return %c0_i32, %c0_i32_0 : i32, i32
  }
  func.func @transform_12(%arg0: i32) -> (i32, i32) {
    %c0_i32 = arith.constant 0 : i32
    %c0_i32_0 = arith.constant 0 : i32
    %c0_i32_1 = arith.constant 0 : i32
    return %c0_i32, %c0_i32_0 : i32, i32
  }
  func.func @transform_13(%arg0: i32) -> (i32, i32) {
    %c0_i32 = arith.constant 0 : i32
    %c0_i32_0 = arith.constant 0 : i32
    %c0_i32_1 = arith.constant 0 : i32
    return %c0_i32, %c0_i32_0 : i32, i32
  }
  func.func @transform_14(%arg0: i32) -> (i32, i32) {
    %c0_i32 = arith.constant 0 : i32
    %c0_i32_0 = arith.constant 0 : i32
    %c0_i32_1 = arith.constant 0 : i32
    return %c0_i32, %c0_i32_0 : i32, i32
  }
  func.func @transform_15(%arg0: i32) -> (i32, i32) {
    %c0_i32 = arith.constant 0 : i32
    %c0_i32_0 = arith.constant 0 : i32
    return %c0_i32, %arg0 : i32, i32
  }
}

</mosaic_0001>

<llo_original>
// kernel: tpu_custom_call.1
$region0: #{tpu_custom_call.1}
  #allocation0 [shape = 'u32[]', space=smem, size = 0x4, offset = 0x4, fixed_abs, tag = 'smem constant byte address 0x4 - core index']
  #allocation1 [shape = 'u32[144,128]{1,0:T(1,128)}', space=vmem, size = 0x12000, scoped, tag = 'internal scratch']
  #allocation2 [shape = 'f32[1,1]{1,0:T(1,128)S(1)}', space=vmem, size = 0x200, scoped, tag = 'scoped memory for tpu_custom_call.1']
  %s0 = inlined_call_operand.hbm [shape: bf16[8,768], index: 0, kind: input, shape index: {}]
  %s1 = inlined_call_operand.hbm [shape: bf16[8,768], index: 1, kind: input, shape index: {}]
  %s2 = inlined_call_operand.vmem [shape: f32[1,128], index: 2, kind: input, shape index: {}]
  %s3 = inlined_call_operand.hbm [shape: f32[1,128], index: 3, kind: input, shape index: {}]
  %s4 = inlined_call_operand.hbm [shape: bf16[768,128], index: 4, kind: input, shape index: {}]
  %s5 = inlined_call_operand.hbm [shape: f32[1,128], index: 5, kind: input, shape index: {}]
  %s6 = inlined_call_operand.hbm [shape: bf16[128,256], index: 6, kind: input, shape index: {}]
  %s7 = inlined_call_operand.hbm [shape: bf16[128,256], index: 7, kind: input, shape index: {}]
  %s8 = inlined_call_operand.hbm [shape: f32[1,256], index: 8, kind: input, shape index: {}]
  %s9 = inlined_call_operand.vmem [shape: bf16[256,128], index: 9, kind: input, shape index: {}]
  %s10 = inlined_call_operand.vmem [shape: f32[1,128], index: 10, kind: input, shape index: {}]
  %s11 = inlined_call_operand.vmem [shape: bf16[128,64], index: 11, kind: input, shape index: {}]
  %s12 = inlined_call_operand.vmem [shape: f32[1,64], index: 12, kind: input, shape index: {}]
  %s13 = inlined_call_operand.vmem [shape: bf16[8,64], index: 13, kind: input, shape index: {}]
  %s14 = inlined_call_operand.<no memory space> [shape: f32[1,1], index: 14, kind: input, shape index: {}]
  %s15 = inlined_call_operand.hbm [shape: f32[8,8], index: 15, kind: output, shape index: {}]
  %s16 = sld [smem:[#allocation0]]
  $region102: #{tpu_custom_call.1} parent=0
    _
  %s18 = ssub.s32 1, %s16
  %s19 = scalar_select 0, %s18, %s16
  %v20 = vstv %s14
  %21 = vst [vmem:[#allocation2] sm:$0x1] %v20
  $region1: #{tpu_custom_call.1} parent=0
    #allocation3 [shape = 'u8[12288]{0}', space=vmem, size = 0x3000, scoped, tag = 'input window, operand 0, single buffered']
    #allocation4 [shape = 's32[1]{0}', space=sflag, size = 0x4, scoped, tag = 'scoped memory for tpu_custom_call.1']
    #allocation5 [shape = 's32[1]{0}', space=sflag, size = 0x4, scoped, tag = 'scoped memory for tpu_custom_call.1']
    #allocation6 [shape = 'u8[12288]{0}', space=vmem, size = 0x3000, scoped, tag = 'input window, operand 1, single buffered']
    #allocation7 [shape = 's32[1]{0}', space=sflag, size = 0x4, scoped, tag = 'scoped memory for tpu_custom_call.1']
    #allocation8 [shape = 'u8[512]{0}', space=vmem, size = 0x400, scoped, tag = 'input window, operand 3, single buffered']
    #allocation9 [shape = 'u8[196608]{0}', space=vmem, size = 0x30000, scoped, tag = 'input window, operand 4, single buffered']
    #allocation10 [shape = 's32[1]{0}', space=sflag, size = 0x4, scoped, tag = 'scoped memory for tpu_custom_call.1']
    #allocation11 [shape = 'u8[512]{0}', space=vmem, size = 0x400, scoped, tag = 'input window, operand 5, single buffered']
    #allocation12 [shape = 'u8[65536]{0}', space=vmem, size = 0x10000, scoped, tag = 'input window, operand 6, single buffered']
    #allocation13 [shape = 's32[1]{0}', space=sflag, size = 0x4, scoped, tag = 'scoped memory for tpu_custom_call.1']
    #allocation14 [shape = 'u8[65536]{0}', space=vmem, size = 0x10000, scoped, tag = 'input window, operand 7, single buffered']
    #allocation15 [shape = 'u8[1024]{0}', space=vmem, size = 0x400, scoped, tag = 'input window, operand 8, single buffered']
    #allocation16 [shape = 's32[1]{0}', space=sflag, size = 0x4, scoped, tag = 'scoped memory for tpu_custom_call.1']
    #allocation17 [shape = 'u8[4096]{0}', space=vmem, size = 0x1000, scoped, tag = 'output window, operand 0, single buffered']
    %22 = vsyncpa [#allocation4], 0
    %23 = vsyncpa [#allocation7], 0
    %24 = vsyncpa [#allocation10], 0
    %25 = vsyncpa [#allocation13], 0
    %26 = vsyncpa [#allocation16], 0
    %27 = vsyncpa [#allocation5], 0
    // Predicated region
    $region2: #{tpu_custom_call.1} parent=1 // pred_check
      _
    $region3: #{tpu_custom_call.1} parent=1 // pred_check_branch
      %29 = sbr.rel (0) target = $region5
    $region4: #{tpu_custom_call.1} parent=1 // pred_region
      %s31 = ssub.s32 384, 384
      %32 = vsyncadd [#allocation4], %s31
      %s34 = sshll.u32 [#allocation3], 4
      %s35 = int_to_ptr.vmem [resolvable:$true] %s34
      %37 = dma.hbm_to_vmem [thread:$0]  %s0, 384, %s35, [#allocation4]
    $region5: #{tpu_custom_call.1} parent=1 // pred_fallthru
      _
    // Predicated region
    $region6: #{tpu_custom_call.1} parent=1 // pred_check
      _
    $region7: #{tpu_custom_call.1} parent=1 // pred_check_branch
      %39 = sbr.rel (0) target = $region9
    $region8: #{tpu_custom_call.1} parent=1 // pred_region
      %s41 = ssub.s32 384, 384
      %42 = vsyncadd [#allocation7], %s41
      %s44 = sshll.u32 [#allocation6], 4
      %s45 = int_to_ptr.vmem [resolvable:$true] %s44
      %47 = dma.hbm_to_vmem [thread:$0]  %s1, 384, %s45, [#allocation7]
    $region9: #{tpu_custom_call.1} parent=1 // pred_fallthru
      _
    // Predicated region
    $region10: #{tpu_custom_call.1} parent=1 // pred_check
      _
    $region11: #{tpu_custom_call.1} parent=1 // pred_check_branch
      %49 = sbr.rel (0) target = $region13
    $region12: #{tpu_custom_call.1} parent=1 // pred_region
      _
    $region13: #{tpu_custom_call.1} parent=1 // pred_fallthru
      _
    // Predicated region
    $region14: #{tpu_custom_call.1} parent=1 // pred_check
      _
    $region15: #{tpu_custom_call.1} parent=1 // pred_check_branch
      %51 = sbr.rel (0) target = $region17
    $region16: #{tpu_custom_call.1} parent=1 // pred_region
      %s53 = ssub.s32 16, 16
      %54 = vsyncadd [#allocation7], %s53
      %s56 = sshll.u32 [#allocation8], 4
      %s57 = int_to_ptr.vmem [resolvable:$true] %s56
      %59 = dma.hbm_to_vmem [thread:$0]  %s3, 16, %s57, [#allocation7]
    $region17: #{tpu_custom_call.1} parent=1 // pred_fallthru
      _
    // Predicated region
    $region18: #{tpu_custom_call.1} parent=1 // pred_check
      _
    $region19: #{tpu_custom_call.1} parent=1 // pred_check_branch
      %61 = sbr.rel (0) target = $region21
    $region20: #{tpu_custom_call.1} parent=1 // pred_region
      %s63 = ssub.s32 6144, 6144
      %64 = vsyncadd [#allocation10], %s63
      %s65 = sshll.u32 [#allocation9], 4
      %s66 = int_to_ptr.vmem [resolvable:$true] %s65
      %71 = dma.hbm_to_vmem [thread:$0]  %s4, 6144, %s66, [#allocation10], 64, 64, 4
    $region21: #{tpu_custom_call.1} parent=1 // pred_fallthru
      _
    // Predicated region
    $region22: #{tpu_custom_call.1} parent=1 // pred_check
      _
    $region23: #{tpu_custom_call.1} parent=1 // pred_check_branch
      %73 = sbr.rel (0) target = $region25
    $region24: #{tpu_custom_call.1} parent=1 // pred_region
      %s75 = ssub.s32 16, 16
      %76 = vsyncadd [#allocation10], %s75
      %s78 = sshll.u32 [#allocation11], 4
      %s79 = int_to_ptr.vmem [resolvable:$true] %s78
      %81 = dma.hbm_to_vmem [thread:$0]  %s5, 16, %s79, [#allocation10]
    $region25: #{tpu_custom_call.1} parent=1 // pred_fallthru
      _
    // Predicated region
    $region26: #{tpu_custom_call.1} parent=1 // pred_check
      _
    $region27: #{tpu_custom_call.1} parent=1 // pred_check_branch
      %83 = sbr.rel (0) target = $region29
    $region28: #{tpu_custom_call.1} parent=1 // pred_region
      %s85 = ssub.s32 2048, 2048
      %86 = vsyncadd [#allocation13], %s85
      %s87 = sshll.u32 [#allocation12], 4
      %s88 = int_to_ptr.vmem [resolvable:$true] %s87
      %93 = dma.hbm_to_vmem [thread:$0]  %s6, 2048, %s88, [#allocation13], 128, 128, 8
    $region29: #{tpu_custom_call.1} parent=1 // pred_fallthru
      _
    // Predicated region
    $region30: #{tpu_custom_call.1} parent=1 // pred_check
      _
    $region31: #{tpu_custom_call.1} parent=1 // pred_check_branch
      %95 = sbr.rel (0) target = $region33
    $region32: #{tpu_custom_call.1} parent=1 // pred_region
      %s97 = ssub.s32 2048, 2048
      %98 = vsyncadd [#allocation13], %s97
      %s99 = sshll.u32 [#allocation14], 4
      %s100 = int_to_ptr.vmem [resolvable:$true] %s99
      %105 = dma.hbm_to_vmem [thread:$0]  %s7, 2048, %s100, [#allocation13], 128, 128, 8
    $region33: #{tpu_custom_call.1} parent=1 // pred_fallthru
      _
    // Predicated region
    $region34: #{tpu_custom_call.1} parent=1 // pred_check
      _
    $region35: #{tpu_custom_call.1} parent=1 // pred_check_branch
      %107 = sbr.rel (0) target = $region37
    $region36: #{tpu_custom_call.1} parent=1 // pred_region
      %s109 = ssub.s32 32, 32
      %110 = vsyncadd [#allocation16], %s109
      %s112 = sshll.u32 [#allocation15], 4
      %s113 = int_to_ptr.vmem [resolvable:$true] %s112
      %115 = dma.hbm_to_vmem [thread:$0]  %s8, 32, %s113, [#allocation16]
    $region37: #{tpu_custom_call.1} parent=1 // pred_fallthru
      _
    // Predicated region
    $region38: #{tpu_custom_call.1} parent=1 // pred_check
      _
    $region39: #{tpu_custom_call.1} parent=1 // pred_check_branch
      %117 = sbr.rel (0) target = $region41
    $region40: #{tpu_custom_call.1} parent=1 // pred_region
      _
    $region41: #{tpu_custom_call.1} parent=1 // pred_fallthru
      _
    // Predicated region
    $region42: #{tpu_custom_call.1} parent=1 // pred_check
      _
    $region43: #{tpu_custom_call.1} parent=1 // pred_check_branch
      %119 = sbr.rel (0) target = $region45
    $region44: #{tpu_custom_call.1} parent=1 // pred_region
      _
    $region45: #{tpu_custom_call.1} parent=1 // pred_fallthru
      _
    // Predicated region
    $region46: #{tpu_custom_call.1} parent=1 // pred_check
      _
    $region47: #{tpu_custom_call.1} parent=1 // pred_check_branch
      %121 = sbr.rel (0) target = $region49
    $region48: #{tpu_custom_call.1} parent=1 // pred_region
      _
    $region49: #{tpu_custom_call.1} parent=1 // pred_fallthru
      _
    // Predicated region
    $region50: #{tpu_custom_call.1} parent=1 // pred_check
      _
    $region51: #{tpu_custom_call.1} parent=1 // pred_check_branch
      %123 = sbr.rel (0) target = $region53
    $region52: #{tpu_custom_call.1} parent=1 // pred_region
      _
    $region53: #{tpu_custom_call.1} parent=1 // pred_fallthru
      _
    // Predicated region
    $region54: #{tpu_custom_call.1} parent=1 // pred_check
      _
    $region55: #{tpu_custom_call.1} parent=1 // pred_check_branch
      %125 = sbr.rel (0) target = $region57
    $region56: #{tpu_custom_call.1} parent=1 // pred_region
      _
    $region57: #{tpu_custom_call.1} parent=1 // pred_fallthru
      _
    // Predicated region
    $region58: #{tpu_custom_call.1} parent=1 // pred_check
      _
    $region59: #{tpu_custom_call.1} parent=1 // pred_check_branch
      %127 = sbr.rel (0) target = $region61
    $region60: #{tpu_custom_call.1} parent=1 // pred_region
      _
    $region61: #{tpu_custom_call.1} parent=1 // pred_fallthru
      _
    // Predicated region
    $region62: #{tpu_custom_call.1} parent=1 // pred_check
      _
    $region63: #{tpu_custom_call.1} parent=1 // pred_check_branch
      %129 = sbr.rel (0) target = $region65
    $region64: #{tpu_custom_call.1} parent=1 // pred_region
      %130 = dma.done [#allocation4], 384
    $region65: #{tpu_custom_call.1} parent=1 // pred_fallthru
      _
    // Predicated region
    $region66: #{tpu_custom_call.1} parent=1 // pred_check
      _
    $region67: #{tpu_custom_call.1} parent=1 // pred_check_branch
      %132 = sbr.rel (0) target = $region69
    $region68: #{tpu_custom_call.1} parent=1 // pred_region
      %133 = dma.done [#allocation7], 384
    $region69: #{tpu_custom_call.1} parent=1 // pred_fallthru
      _
    // Predicated region
    $region70: #{tpu_custom_call.1} parent=1 // pred_check
      _
    $region71: #{tpu_custom_call.1} parent=1 // pred_check_branch
      %135 = sbr.rel (0) target = $region73
    $region72: #{tpu_custom_call.1} parent=1 // pred_region
      %136 = dma.done [#allocation7], 16
    $region73: #{tpu_custom_call.1} parent=1 // pred_fallthru
      _
    // Predicated region
    $region74: #{tpu_custom_call.1} parent=1 // pred_check
      _
    $region75: #{tpu_custom_call.1} parent=1 // pred_check_branch
      %138 = sbr.rel (0) target = $region77
    $region76: #{tpu_custom_call.1} parent=1 // pred_region
      %139 = dma.done [#allocation10], 6144
    $region77: #{tpu_custom_call.1} parent=1 // pred_fallthru
      _
    // Predicated region
    $region78: #{tpu_custom_call.1} parent=1 // pred_check
      _
    $region79: #{tpu_custom_call.1} parent=1 // pred_check_branch
      %141 = sbr.rel (0) target = $region81
    $region80: #{tpu_custom_call.1} parent=1 // pred_region
      %142 = dma.done [#allocation10], 16
    $region81: #{tpu_custom_call.1} parent=1 // pred_fallthru
      _
    // Predicated region
    $region82: #{tpu_custom_call.1} parent=1 // pred_check
      _
    $region83: #{tpu_custom_call.1} parent=1 // pred_check_branch
      %144 = sbr.rel (0) target = $region85
    $region84: #{tpu_custom_call.1} parent=1 // pred_region
      %145 = dma.done [#allocation13], 2048
    $region85: #{tpu_custom_call.1} parent=1 // pred_fallthru
      _
    // Predicated region
    $region86: #{tpu_custom_call.1} parent=1 // pred_check
      _
    $region87: #{tpu_custom_call.1} parent=1 // pred_check_branch
      %147 = sbr.rel (0) target = $region89
    $region88: #{tpu_custom_call.1} parent=1 // pred_region
      %148 = dma.done [#allocation13], 2048
    $region89: #{tpu_custom_call.1} parent=1 // pred_fallthru
      _
    // Predicated region
    $region90: #{tpu_custom_call.1} parent=1 // pred_check
      _
    $region91: #{tpu_custom_call.1} parent=1 // pred_check_branch
      %150 = sbr.rel (0) target = $region93
    $region92: #{tpu_custom_call.1} parent=1 // pred_region
      %151 = dma.done [#allocation16], 32
    $region93: #{tpu_custom_call.1} parent=1 // pred_fallthru
      _
    %v153 = vld [vmem:[#allocation3] sm:$0xff]
    %v154 = vld [vmem:[#allocation3 + $0x8] sm:$0xff]
    %v155 = vld [vmem:[#allocation3 + $0x10] sm:$0xff]
    %v156 = vld [vmem:[#allocation6] sm:$0xff]
    %v157 = vld [vmem:[#allocation6 + $0x8] sm:$0xff]
    %v158 = vld [vmem:[#allocation6 + $0x10] sm:$0xff]
    %v159 = vunpack.c.l.bf16 %v153
    %v160 = vunpack.c.h.bf16 %v153
    %v161 = vunpack.c.l.bf16 %v154
    %v162 = vunpack.c.h.bf16 %v154
    %v163 = vunpack.c.l.bf16 %v155
    %v164 = vunpack.c.h.bf16 %v155
    %v165 = vunpack.c.l.bf16 %v156
    %v166 = vunpack.c.h.bf16 %v156
    %v167 = vunpack.c.l.bf16 %v157
    %v168 = vunpack.c.h.bf16 %v157
    %v169 = vunpack.c.l.bf16 %v158
    %v170 = vunpack.c.h.bf16 %v158
    %v171 = vsub.f32 %v159, %v165
    %v172 = vsub.f32 %v160, %v166
    %v173 = vsub.f32 %v161, %v167
    %v174 = vsub.f32 %v162, %v168
    %v175 = vsub.f32 %v163, %v169
    %v176 = vsub.f32 %v164, %v170
    %v177 = vmul.f32 %v171, %v171
    %v178 = vmul.f32 %v172, %v172
    %v179 = vmul.f32 %v173, %v173
    %v180 = vmul.f32 %v174, %v174
    %v181 = vmul.f32 %v175, %v175
    %v182 = vmul.f32 %v176, %v176
    %v183 = vadd.f32 %v177, %v178
    %v184 = vadd.f32 %v183, %v179
    %v185 = vadd.f32 %v184, %v180
    %v186 = vadd.f32 %v185, %v181
    %v187 = vadd.f32 %v186, %v182
    %188 = vadd.xlane.f32.xlu0 %v187
    %v189 = vpop.xlane.xlu0 %188
    %v190 = vrcp.pop 768.0
    %v191 = vmul.f32 %v189, %v190
    %v192 = vld [vmem:[%s2] sm:$0x1]
    %v194 = vlaneseq
    %v195 = vshrl.u32 %v194, 7
    %v196 = vsub.s32 0, %v195
    %v197 = vrot.slane %v192, %v196
    %v199 = vmul.f32 %v191, %v197
    %v200 = vld [vmem:[#allocation8] sm:$0x1]
    %v202 = vlaneseq
    %v203 = vshrl.u32 %v202, 7
    %v204 = vsub.s32 0, %v203
    %v205 = vrot.slane %v200, %v204
    %v207 = vadd.f32 %v199, %v205
    %v208 = vmax.f32 %v207, 0.0
    %v209 = vld [vmem:[#allocation9] sm:$0xf]
    %v210 = vld [vmem:[#allocation9 + $0x4] sm:$0xf]
    %v211 = vld [vmem:[#allocation9 + $0x8] sm:$0xf]
    %v212 = vld [vmem:[#allocation9 + $0xc] sm:$0xf]
    %v213 = vld [vmem:[#allocation9 + $0x10] sm:$0xf]
    %v214 = vld [vmem:[#allocation9 + $0x14] sm:$0xf]
    %v215 = vld [vmem:[#allocation9 + $0x18] sm:$0xf]
    %v216 = vld [vmem:[#allocation9 + $0x1c] sm:$0xf]
    %v217 = vld [vmem:[#allocation9 + $0x20] sm:$0xf]
    %v218 = vld [vmem:[#allocation9 + $0x24] sm:$0xf]
    %v219 = vld [vmem:[#allocation9 + $0x28] sm:$0xf]
    %v220 = vld [vmem:[#allocation9 + $0x2c] sm:$0xf]
    %v221 = vld [vmem:[#allocation9 + $0x30] sm:$0xf]
    %v222 = vld [vmem:[#allocation9 + $0x34] sm:$0xf]
    %v223 = vld [vmem:[#allocation9 + $0x38] sm:$0xf]
    %v224 = vld [vmem:[#allocation9 + $0x3c] sm:$0xf]
    %v225 = vld [vmem:[#allocation9 + $0x40] sm:$0xf]
    %v226 = vld [vmem:[#allocation9 + $0x44] sm:$0xf]
    %v227 = vld [vmem:[#allocation9 + $0x48] sm:$0xf]
    %v228 = vld [vmem:[#allocation9 + $0x4c] sm:$0xf]
    %v229 = vld [vmem:[#allocation9 + $0x50] sm:$0xf]
    %v230 = vld [vmem:[#allocation9 + $0x54] sm:$0xf]
    %v231 = vld [vmem:[#allocation9 + $0x58] sm:$0xf]
    %v232 = vld [vmem:[#allocation9 + $0x5c] sm:$0xf]
    %v233 = vld [vmem:[#allocation9 + $0x60] sm:$0xf]
    %v234 = vld [vmem:[#allocation9 + $0x64] sm:$0xf]
    %v235 = vld [vmem:[#allocation9 + $0x68] sm:$0xf]
    %v236 = vld [vmem:[#allocation9 + $0x6c] sm:$0xf]
    %v237 = vld [vmem:[#allocation9 + $0x70] sm:$0xf]
    %v238 = vld [vmem:[#allocation9 + $0x74] sm:$0xf]
    %v239 = vld [vmem:[#allocation9 + $0x78] sm:$0xf]
    %v240 = vld [vmem:[#allocation9 + $0x7c] sm:$0xf]
    %v241 = vld [vmem:[#allocation9 + $0x80] sm:$0xf]
    %v242 = vld [vmem:[#allocation9 + $0x84] sm:$0xf]
    %v243 = vld [vmem:[#allocation9 + $0x88] sm:$0xf]
    %v244 = vld [vmem:[#allocation9 + $0x8c] sm:$0xf]
    %v245 = vld [vmem:[#allocation9 + $0x90] sm:$0xf]
    %v246 = vld [vmem:[#allocation9 + $0x94] sm:$0xf]
    %v247 = vld [vmem:[#allocation9 + $0x98] sm:$0xf]
    %v248 = vld [vmem:[#allocation9 + $0x9c] sm:$0xf]
    %v249 = vld [vmem:[#allocation9 + $0xa0] sm:$0xf]
    %v250 = vld [vmem:[#allocation9 + $0xa4] sm:$0xf]
    %v251 = vld [vmem:[#allocation9 + $0xa8] sm:$0xf]
    %v252 = vld [vmem:[#allocation9 + $0xac] sm:$0xf]
    %v253 = vld [vmem:[#allocation9 + $0xb0] sm:$0xf]
    %v254 = vld [vmem:[#allocation9 + $0xb4] sm:$0xf]
    %v255 = vld [vmem:[#allocation9 + $0xb8] sm:$0xf]
    %v256 = vld [vmem:[#allocation9 + $0xbc] sm:$0xf]
    %v257 = vld [vmem:[#allocation9 + $0xc0] sm:$0xf]
    %v258 = vld [vmem:[#allocation9 + $0xc4] sm:$0xf]
    %v259 = vld [vmem:[#allocation9 + $0xc8] sm:$0xf]
    %v260 = vld [vmem:[#allocation9 + $0xcc] sm:$0xf]
    %v261 = vld [vmem:[#allocation9 + $0xd0] sm:$0xf]
    %v262 = vld [vmem:[#allocation9 + $0xd4] sm:$0xf]
    %v263 = vld [vmem:[#allocation9 + $0xd8] sm:$0xf]
    %v264 = vld [vmem:[#allocation9 + $0xdc] sm:$0xf]
    %v265 = vld [vmem:[#allocation9 + $0xe0] sm:$0xf]
    %v266 = vld [vmem:[#allocation9 + $0xe4] sm:$0xf]
    %v267 = vld [vmem:[#allocation9 + $0xe8] sm:$0xf]
    %v268 = vld [vmem:[#allocation9 + $0xec] sm:$0xf]
    %v269 = vld [vmem:[#allocation9 + $0xf0] sm:$0xf]
    %v270 = vld [vmem:[#allocation9 + $0xf4] sm:$0xf]
    %v271 = vld [vmem:[#allocation9 + $0xf8] sm:$0xf]
    %v272 = vld [vmem:[#allocation9 + $0xfc] sm:$0xf]
    %v273 = vld [vmem:[#allocation9 + $0x100] sm:$0xf]
    %v274 = vld [vmem:[#allocation9 + $0x104] sm:$0xf]
    %v275 = vld [vmem:[#allocation9 + $0x108] sm:$0xf]
    %v276 = vld [vmem:[#allocation9 + $0x10c] sm:$0xf]
    %v277 = vld [vmem:[#allocation9 + $0x110] sm:$0xf]
    %v278 = vld [vmem:[#allocation9 + $0x114] sm:$0xf]
    %v279 = vld [vmem:[#allocation9 + $0x118] sm:$0xf]
    %v280 = vld [vmem:[#allocation9 + $0x11c] sm:$0xf]
    %v281 = vld [vmem:[#allocation9 + $0x120] sm:$0xf]
    %v282 = vld [vmem:[#allocation9 + $0x124] sm:$0xf]
    %v283 = vld [vmem:[#allocation9 + $0x128] sm:$0xf]
    %v284 = vld [vmem:[#allocation9 + $0x12c] sm:$0xf]
    %v285 = vld [vmem:[#allocation9 + $0x130] sm:$0xf]
    %v286 = vld [vmem:[#allocation9 + $0x134] sm:$0xf]
    %v287 = vld [vmem:[#allocation9 + $0x138] sm:$0xf]
    %v288 = vld [vmem:[#allocation9 + $0x13c] sm:$0xf]
    %v289 = vld [vmem:[#allocation9 + $0x140] sm:$0xf]
    %v290 = vld [vmem:[#allocation9 + $0x144] sm:$0xf]
    %v291 = vld [vmem:[#allocation9 + $0x148] sm:$0xf]
    %v292 = vld [vmem:[#allocation9 + $0x14c] sm:$0xf]
    %v293 = vld [vmem:[#allocation9 + $0x150] sm:$0xf]
    %v294 = vld [vmem:[#allocation9 + $0x154] sm:$0xf]
    %v295 = vld [vmem:[#allocation9 + $0x158] sm:$0xf]
    %v296 = vld [vmem:[#allocation9 + $0x15c] sm:$0xf]
    %v297 = vld [vmem:[#allocation9 + $0x160] sm:$0xf]
    %v298 = vld [vmem:[#allocation9 + $0x164] sm:$0xf]
    %v299 = vld [vmem:[#allocation9 + $0x168] sm:$0xf]
    %v300 = vld [vmem:[#allocation9 + $0x16c] sm:$0xf]
    %v301 = vld [vmem:[#allocation9 + $0x170] sm:$0xf]
    %v302 = vld [vmem:[#allocation9 + $0x174] sm:$0xf]
    %v303 = vld [vmem:[#allocation9 + $0x178] sm:$0xf]
    %v304 = vld [vmem:[#allocation9 + $0x17c] sm:$0xf]
    %v305 = vld [vmem:[#allocation11] sm:$0x1]
    %v307 = vlaneseq
    %v308 = vshrl.u32 %v307, 7
    %v309 = vsub.s32 0, %v308
    %v310 = vrot.slane %v305, %v309
    %v315 = vunpack.c.l.b16 %v153
    %v316 = vunpack.c.h.b16 %v153
    %v317 = vunpack.c.l.b16 %v154
    %v318 = vunpack.c.h.b16 %v154
    %v319 = vunpack.c.l.b16 %v155
    %v320 = vunpack.c.h.b16 %v155
    %v321 = vpack.c.b16 %v315, %v315
    %v322 = vpack.c.b16 %v316, %v316
    %v323 = vpack.c.b16 %v317, %v317
    %v324 = vpack.c.b16 %v318, %v318
    %v325 = vpack.c.b16 %v319, %v319
    %v326 = vpack.c.b16 %v320, %v320
    %v429 = vunpack.c.l.b16 %v209
    %v430 = vunpack.c.l.b16 %v210
    %v431 = vunpack.c.l.b16 %v211
    %v432 = vunpack.c.l.b16 %v212
    %v433 = vunpack.c.l.b16 %v213
    %v434 = vunpack.c.l.b16 %v214
    %v435 = vunpack.c.l.b16 %v215
    %v436 = vunpack.c.l.b16 %v216
    %v437 = vunpack.c.l.b16 %v217
    %v438 = vunpack.c.l.b16 %v218
    %v439 = vunpack.c.l.b16 %v219
    %v440 = vunpack.c.l.b16 %v220
    %v441 = vunpack.c.l.b16 %v221
    %v442 = vunpack.c.l.b16 %v222
    %v443 = vunpack.c.l.b16 %v223
    %v444 = vunpack.c.l.b16 %v224
    %v445 = vunpack.c.l.b16 %v225
    %v446 = vunpack.c.l.b16 %v226
    %v447 = vunpack.c.l.b16 %v227
    %v448 = vunpack.c.l.b16 %v228
    %v449 = vunpack.c.l.b16 %v229
    %v450 = vunpack.c.l.b16 %v230
    %v451 = vunpack.c.l.b16 %v231
    %v452 = vunpack.c.l.b16 %v232
    %v453 = vunpack.c.l.b16 %v233
    %v454 = vunpack.c.l.b16 %v234
    %v455 = vunpack.c.l.b16 %v235
    %v456 = vunpack.c.l.b16 %v236
    %v457 = vunpack.c.l.b16 %v237
    %v458 = vunpack.c.l.b16 %v238
    %v459 = vunpack.c.l.b16 %v239
    %v460 = vunpack.c.l.b16 %v240
    %v461 = vunpack.c.l.b16 %v241
    %v462 = vunpack.c.l.b16 %v242
    %v463 = vunpack.c.l.b16 %v243
    %v464 = vunpack.c.l.b16 %v244
    %v465 = vunpack.c.l.b16 %v245
    %v466 = vunpack.c.l.b16 %v246
    %v467 = vunpack.c.l.b16 %v247
    %v468 = vunpack.c.l.b16 %v248
    %v469 = vunpack.c.l.b16 %v249
    %v470 = vunpack.c.l.b16 %v250
    %v471 = vunpack.c.l.b16 %v251
    %v472 = vunpack.c.l.b16 %v252
    %v473 = vunpack.c.l.b16 %v253
    %v474 = vunpack.c.l.b16 %v254
    %v475 = vunpack.c.l.b16 %v255
    %v476 = vunpack.c.l.b16 %v256
    %v477 = vunpack.c.l.b16 %v257
    %v478 = vunpack.c.l.b16 %v258
    %v479 = vunpack.c.l.b16 %v259
    %v480 = vunpack.c.l.b16 %v260
    %v481 = vunpack.c.l.b16 %v261
    %v482 = vunpack.c.l.b16 %v262
    %v483 = vunpack.c.l.b16 %v263
    %v484 = vunpack.c.l.b16 %v264
    %v485 = vunpack.c.l.b16 %v265
    %v486 = vunpack.c.l.b16 %v266
    %v487 = vunpack.c.l.b16 %v267
    %v488 = vunpack.c.l.b16 %v268
    %v489 = vunpack.c.l.b16 %v269
    %v490 = vunpack.c.l.b16 %v270
    %v491 = vunpack.c.l.b16 %v271
    %v492 = vunpack.c.l.b16 %v272
    %v493 = vunpack.c.l.b16 %v273
    %v494 = vunpack.c.l.b16 %v274
    %v495 = vunpack.c.l.b16 %v275
    %v496 = vunpack.c.l.b16 %v276
    %v497 = vunpack.c.l.b16 %v277
    %v498 = vunpack.c.l.b16 %v278
    %v499 = vunpack.c.l.b16 %v279
    %v500 = vunpack.c.l.b16 %v280
    %v501 = vunpack.c.l.b16 %v281
    %v502 = vunpack.c.l.b16 %v282
    %v503 = vunpack.c.l.b16 %v283
    %v504 = vunpack.c.l.b16 %v284
    %v505 = vunpack.c.l.b16 %v285
    %v506 = vunpack.c.l.b16 %v286
    %v507 = vunpack.c.l.b16 %v287
    %v508 = vunpack.c.l.b16 %v288
    %v509 = vunpack.c.l.b16 %v289
    %v510 = vunpack.c.l.b16 %v290
    %v511 = vunpack.c.l.b16 %v291
    %v512 = vunpack.c.l.b16 %v292
    %v513 = vunpack.c.l.b16 %v293
    %v514 = vunpack.c.l.b16 %v294
    %v515 = vunpack.c.l.b16 %v295
    %v516 = vunpack.c.l.b16 %v296
    %v517 = vunpack.c.l.b16 %v297
    %v518 = vunpack.c.l.b16 %v298
    %v519 = vunpack.c.l.b16 %v299
    %v520 = vunpack.c.l.b16 %v300
    %v521 = vunpack.c.l.b16 %v301
    %v522 = vunpack.c.l.b16 %v302
    %v523 = vunpack.c.l.b16 %v303
    %v524 = vunpack.c.l.b16 %v304
    %v525 = vpack.c.b16 %v430, %v429
    %v526 = vpack.c.b16 %v432, %v431
    %v527 = vpack.c.b16 %v434, %v433
    %v528 = vpack.c.b16 %v436, %v435
    %v529 = vpack.c.b16 %v438, %v437
    %v530 = vpack.c.b16 %v440, %v439
    %v531 = vpack.c.b16 %v442, %v441
    %v532 = vpack.c.b16 %v444, %v443
    %v533 = vpack.c.b16 %v446, %v445
    %v534 = vpack.c.b16 %v448, %v447
    %v535 = vpack.c.b16 %v450, %v449
    %v536 = vpack.c.b16 %v452, %v451
    %v537 = vpack.c.b16 %v454, %v453
    %v538 = vpack.c.b16 %v456, %v455
    %v539 = vpack.c.b16 %v458, %v457
    %v540 = vpack.c.b16 %v460, %v459
    %v541 = vpack.c.b16 %v462, %v461
    %v542 = vpack.c.b16 %v464, %v463
    %v543 = vpack.c.b16 %v466, %v465
    %v544 = vpack.c.b16 %v468, %v467
    %v545 = vpack.c.b16 %v470, %v469
    %v546 = vpack.c.b16 %v472, %v471
    %v547 = vpack.c.b16 %v474, %v473
    %v548 = vpack.c.b16 %v476, %v475
    %v549 = vpack.c.b16 %v478, %v477
    %v550 = vpack.c.b16 %v480, %v479
    %v551 = vpack.c.b16 %v482, %v481
    %v552 = vpack.c.b16 %v484, %v483
    %v553 = vpack.c.b16 %v486, %v485
    %v554 = vpack.c.b16 %v488, %v487
    %v555 = vpack.c.b16 %v490, %v489
    %v556 = vpack.c.b16 %v492, %v491
    %v557 = vpack.c.b16 %v494, %v493
    %v558 = vpack.c.b16 %v496, %v495
    %v559 = vpack.c.b16 %v498, %v497
    %v560 = vpack.c.b16 %v500, %v499
    %v561 = vpack.c.b16 %v502, %v501
    %v562 = vpack.c.b16 %v504, %v503
    %v563 = vpack.c.b16 %v506, %v505
    %v564 = vpack.c.b16 %v508, %v507
    %v565 = vpack.c.b16 %v510, %v509
    %v566 = vpack.c.b16 %v512, %v511
    %v567 = vpack.c.b16 %v514, %v513
    %v568 = vpack.c.b16 %v516, %v515
    %v569 = vpack.c.b16 %v518, %v517
    %v570 = vpack.c.b16 %v520, %v519
    %v571 = vpack.c.b16 %v522, %v521
    %v572 = vpack.c.b16 %v524, %v523
    %621 = vmatprep.subr.bf16.mxu0 0
    %622 = vmatpush1.bf16.msra.mxu0 %v525
    %623 = vmatprep.subr.bf16.mxu0 0
    %624 = vmatpush1.bf16.msra.mxu0 %v526
    %625 = vmatprep.subr.bf16.mxu0 0
    %626 = vmatpush1.bf16.msra.mxu0 %v527
    %627 = vmatprep.subr.bf16.mxu0 0
    %628 = vmatpush1.bf16.msra.mxu0 %v528
    %629 = vmatprep.subr.bf16.mxu0 0
    %630 = vmatpush1.bf16.msra.mxu0 %v529
    %631 = vmatprep.subr.bf16.mxu0 0
    %632 = vmatpush1.bf16.msra.mxu0 %v530
    %633 = vmatprep.subr.bf16.mxu0 0
    %634 = vmatpush1.bf16.msra.mxu0 %v531
    %635 = vmatprep.subr.bf16.mxu0 0
    %636 = vmatpush1.bf16.msra.mxu0 %v532
    %637 = vmatprep.subr.bf16.mxu0 0
    %638 = vmatpush1.bf16.msra.mxu0 %v533
    %639 = vmatprep.subr.bf16.mxu0 0
    %640 = vmatpush1.bf16.msra.mxu0 %v534
    %641 = vmatprep.subr.bf16.mxu0 0
    %642 = vmatpush1.bf16.msra.mxu0 %v535
    %643 = vmatprep.subr.bf16.mxu0 0
    %644 = vmatpush1.bf16.msra.mxu0 %v536
    %645 = vmatprep.subr.bf16.mxu0 0
    %646 = vmatpush1.bf16.msra.mxu0 %v537
    %647 = vmatprep.subr.bf16.mxu0 0
    %648 = vmatpush1.bf16.msra.mxu0 %v538
    %649 = vmatprep.subr.bf16.mxu0 0
    %650 = vmatpush1.bf16.msra.mxu0 %v539
    %651 = vmatprep.subr.bf16.mxu0 0
    %652 = vmatpush1.bf16.msra.mxu0 %v540
    %653 = vmatprep.mubr.bf16.mxu0 %v322
    %654 = vmatmul.mubr.bf16.gmra.mrb[0].mxu0 %v321
    %v655 = vpop.f32.mrb[0].mxu0
    %v656 = vadd.f32 %v310, %v655
    %v657 = vpop.f32.mrb[0].mxu0
    %v658 = vpop.f32.mrb[0].mxu0
    %v659 = vpop.f32.mrb[0].mxu0
    %660 = vdwg.mxu0
    %661 = vmatprep.subr.bf16.mxu0 0
    %662 = vmatpush1.bf16.msra.mxu0 %v541
    %663 = vmatprep.subr.bf16.mxu0 0
    %664 = vmatpush1.bf16.msra.mxu0 %v542
    %665 = vmatprep.subr.bf16.mxu0 0
    %666 = vmatpush1.bf16.msra.mxu0 %v543
    %667 = vmatprep.subr.bf16.mxu0 0
    %668 = vmatpush1.bf16.msra.mxu0 %v544
    %669 = vmatprep.subr.bf16.mxu0 0
    %670 = vmatpush1.bf16.msra.mxu0 %v545
    %671 = vmatprep.subr.bf16.mxu0 0
    %672 = vmatpush1.bf16.msra.mxu0 %v546
    %673 = vmatprep.subr.bf16.mxu0 0
    %674 = vmatpush1.bf16.msra.mxu0 %v547
    %675 = vmatprep.subr.bf16.mxu0 0
    %676 = vmatpush1.bf16.msra.mxu0 %v548
    %677 = vmatprep.subr.bf16.mxu0 0
    %678 = vmatpush1.bf16.msra.mxu0 %v549
    %679 = vmatprep.subr.bf16.mxu0 0
    %680 = vmatpush1.bf16.msra.mxu0 %v550
    %681 = vmatprep.subr.bf16.mxu0 0
    %682 = vmatpush1.bf16.msra.mxu0 %v551
    %683 = vmatprep.subr.bf16.mxu0 0
    %684 = vmatpush1.bf16.msra.mxu0 %v552
    %685 = vmatprep.subr.bf16.mxu0 0
    %686 = vmatpush1.bf16.msra.mxu0 %v553
    %687 = vmatprep.subr.bf16.mxu0 0
    %688 = vmatpush1.bf16.msra.mxu0 %v554
    %689 = vmatprep.subr.bf16.mxu0 0
    %690 = vmatpush1.bf16.msra.mxu0 %v555
    %691 = vmatprep.subr.bf16.mxu0 0
    %692 = vmatpush1.bf16.msra.mxu0 %v556
    %693 = vmatprep.mubr.bf16.mxu0 %v324
    %694 = vmatmul.mubr.bf16.gmra.mrb[0].mxu0 %v323
    %v695 = vpop.f32.mrb[0].mxu0
    %v696 = vadd.f32 %v656, %v695
    %v697 = vpop.f32.mrb[0].mxu0
    %v698 = vpop.f32.mrb[0].mxu0
    %v699 = vpop.f32.mrb[0].mxu0
    %700 = vdwg.mxu0
    %701 = vmatprep.subr.bf16.mxu0 0
    %702 = vmatpush1.bf16.msra.mxu0 %v557
    %703 = vmatprep.subr.bf16.mxu0 0
    %704 = vmatpush1.bf16.msra.mxu0 %v558
    %705 = vmatprep.subr.bf16.mxu0 0
    %706 = vmatpush1.bf16.msra.mxu0 %v559
    %707 = vmatprep.subr.bf16.mxu0 0
    %708 = vmatpush1.bf16.msra.mxu0 %v560
    %709 = vmatprep.subr.bf16.mxu0 0
    %710 = vmatpush1.bf16.msra.mxu0 %v561
    %711 = vmatprep.subr.bf16.mxu0 0
    %712 = vmatpush1.bf16.msra.mxu0 %v562
    %713 = vmatprep.subr.bf16.mxu0 0
    %714 = vmatpush1.bf16.msra.mxu0 %v563
    %715 = vmatprep.subr.bf16.mxu0 0
    %716 = vmatpush1.bf16.msra.mxu0 %v564
    %717 = vmatprep.subr.bf16.mxu0 0
    %718 = vmatpush1.bf16.msra.mxu0 %v565
    %719 = vmatprep.subr.bf16.mxu0 0
    %720 = vmatpush1.bf16.msra.mxu0 %v566
    %721 = vmatprep.subr.bf16.mxu0 0
    %722 = vmatpush1.bf16.msra.mxu0 %v567
    %723 = vmatprep.subr.bf16.mxu0 0
    %724 = vmatpush1.bf16.msra.mxu0 %v568
    %725 = vmatprep.subr.bf16.mxu0 0
    %726 = vmatpush1.bf16.msra.mxu0 %v569
    %727 = vmatprep.subr.bf16.mxu0 0
    %728 = vmatpush1.bf16.msra.mxu0 %v570
    %729 = vmatprep.subr.bf16.mxu0 0
    %730 = vmatpush1.bf16.msra.mxu0 %v571
    %731 = vmatprep.subr.bf16.mxu0 0
    %732 = vmatpush1.bf16.msra.mxu0 %v572
    %733 = vmatprep.mubr.bf16.mxu0 %v326
    %734 = vmatmul.mubr.bf16.gmra.mrb[0].mxu0 %v325
    %v735 = vpop.f32.mrb[0].mxu0
    %v736 = vadd.f32 %v696, %v735
    %v737 = vpop.f32.mrb[0].mxu0
    %v738 = vpop.f32.mrb[0].mxu0
    %v739 = vpop.f32.mrb[0].mxu0
    %740 = vdwg.mxu0
    %v741 = vpack.c.bf16 %v208, %v208
    %v742 = vld [vmem:[#allocation12] sm:$0xff]
    %v743 = vld [vmem:[#allocation12 + $0x8] sm:$0xff]
    %v744 = vld [vmem:[#allocation12 + $0x10] sm:$0xff]
    %v745 = vld [vmem:[#allocation12 + $0x18] sm:$0xff]
    %v746 = vld [vmem:[#allocation12 + $0x20] sm:$0xff]
    %v747 = vld [vmem:[#allocation12 + $0x28] sm:$0xff]
    %v748 = vld [vmem:[#allocation12 + $0x30] sm:$0xff]
    %v749 = vld [vmem:[#allocation12 + $0x38] sm:$0xff]
    %v750 = vld [vmem:[#allocation12 + $0x40] sm:$0xff]
    %v751 = vld [vmem:[#allocation12 + $0x48] sm:$0xff]
    %v752 = vld [vmem:[#allocation12 + $0x50] sm:$0xff]
    %v753 = vld [vmem:[#allocation12 + $0x58] sm:$0xff]
    %v754 = vld [vmem:[#allocation12 + $0x60] sm:$0xff]
    %v755 = vld [vmem:[#allocation12 + $0x68] sm:$0xff]
    %v756 = vld [vmem:[#allocation12 + $0x70] sm:$0xff]
    %v757 = vld [vmem:[#allocation12 + $0x78] sm:$0xff]
    %v758 = vpack.c.bf16 %v736, %v736
    %v759 = vld [vmem:[#allocation14] sm:$0xff]
    %v760 = vld [vmem:[#allocation14 + $0x8] sm:$0xff]
    %v761 = vld [vmem:[#allocation14 + $0x10] sm:$0xff]
    %v762 = vld [vmem:[#allocation14 + $0x18] sm:$0xff]
    %v763 = vld [vmem:[#allocation14 + $0x20] sm:$0xff]
    %v764 = vld [vmem:[#allocation14 + $0x28] sm:$0xff]
    %v765 = vld [vmem:[#allocation14 + $0x30] sm:$0xff]
    %v766 = vld [vmem:[#allocation14 + $0x38] sm:$0xff]
    %v767 = vld [vmem:[#allocation14 + $0x40] sm:$0xff]
    %v768 = vld [vmem:[#allocation14 + $0x48] sm:$0xff]
    %v769 = vld [vmem:[#allocation14 + $0x50] sm:$0xff]
    %v770 = vld [vmem:[#allocation14 + $0x58] sm:$0xff]
    %v771 = vld [vmem:[#allocation14 + $0x60] sm:$0xff]
    %v772 = vld [vmem:[#allocation14 + $0x68] sm:$0xff]
    %v773 = vld [vmem:[#allocation14 + $0x70] sm:$0xff]
    %v774 = vld [vmem:[#allocation14 + $0x78] sm:$0xff]
    %v791 = vunpack.c.l.b16 %v759
    %v792 = vunpack.c.h.b16 %v759
    %v793 = vunpack.c.l.b16 %v760
    %v794 = vunpack.c.h.b16 %v760
    %v795 = vunpack.c.l.b16 %v761
    %v796 = vunpack.c.h.b16 %v761
    %v797 = vunpack.c.l.b16 %v762
    %v798 = vunpack.c.h.b16 %v762
    %v799 = vunpack.c.l.b16 %v763
    %v800 = vunpack.c.h.b16 %v763
    %v801 = vunpack.c.l.b16 %v764
    %v802 = vunpack.c.h.b16 %v764
    %v803 = vunpack.c.l.b16 %v765
    %v804 = vunpack.c.h.b16 %v765
    %v805 = vunpack.c.l.b16 %v766
    %v806 = vunpack.c.h.b16 %v766
    %v807 = vunpack.c.l.b16 %v767
    %v808 = vunpack.c.h.b16 %v767
    %v809 = vunpack.c.l.b16 %v768
    %v810 = vunpack.c.h.b16 %v768
    %v811 = vunpack.c.l.b16 %v769
    %v812 = vunpack.c.h.b16 %v769
    %v813 = vunpack.c.l.b16 %v770
    %v814 = vunpack.c.h.b16 %v770
    %v815 = vunpack.c.l.b16 %v771
    %v816 = vunpack.c.h.b16 %v771
    %v817 = vunpack.c.l.b16 %v772
    %v818 = vunpack.c.h.b16 %v772
    %v819 = vunpack.c.l.b16 %v773
    %v820 = vunpack.c.h.b16 %v773
    %v821 = vunpack.c.l.b16 %v774
    %v822 = vunpack.c.h.b16 %v774
    %v823 = vpack.c.b16 %v793, %v791
    %v824 = vpack.c.b16 %v794, %v792
    %v825 = vpack.c.b16 %v797, %v795
    %v826 = vpack.c.b16 %v798, %v796
    %v827 = vpack.c.b16 %v801, %v799
    %v828 = vpack.c.b16 %v802, %v800
    %v829 = vpack.c.b16 %v805, %v803
    %v830 = vpack.c.b16 %v806, %v804
    %v831 = vpack.c.b16 %v809, %v807
    %v832 = vpack.c.b16 %v810, %v808
    %v833 = vpack.c.b16 %v813, %v811
    %v834 = vpack.c.b16 %v814, %v812
    %v835 = vpack.c.b16 %v817, %v815
    %v836 = vpack.c.b16 %v818, %v816
    %v837 = vpack.c.b16 %v821, %v819
    %v838 = vpack.c.b16 %v822, %v820
    %855 = vmatprep.subr.bf16.mxu0 %v824
    %856 = vmatpush1.bf16.msra.mxu0 %v823
    %857 = vmatprep.subr.bf16.mxu0 %v826
    %858 = vmatpush1.bf16.msra.mxu0 %v825
    %859 = vmatprep.subr.bf16.mxu0 %v828
    %860 = vmatpush1.bf16.msra.mxu0 %v827
    %861 = vmatprep.subr.bf16.mxu0 %v830
    %862 = vmatpush1.bf16.msra.mxu0 %v829
    %863 = vmatprep.subr.bf16.mxu0 %v832
    %864 = vmatpush1.bf16.msra.mxu0 %v831
    %865 = vmatprep.subr.bf16.mxu0 %v834
    %866 = vmatpush1.bf16.msra.mxu0 %v833
    %867 = vmatprep.subr.bf16.mxu0 %v836
    %868 = vmatpush1.bf16.msra.mxu0 %v835
    %869 = vmatprep.subr.bf16.mxu0 %v838
    %870 = vmatpush1.bf16.msra.mxu0 %v837
    %871 = vmatprep.subr.bf16.mxu0 0
    %872 = vmatpush1.bf16.msra.mxu0 0
    %873 = vmatprep.subr.bf16.mxu0 0
    %874 = vmatpush1.bf16.msra.mxu0 0
    %875 = vmatprep.subr.bf16.mxu0 0
    %876 = vmatpush1.bf16.msra.mxu0 0
    %877 = vmatprep.subr.bf16.mxu0 0
    %878 = vmatpush1.bf16.msra.mxu0 0
    %879 = vmatprep.subr.bf16.mxu0 0
    %880 = vmatpush1.bf16.msra.mxu0 0
    %881 = vmatprep.subr.bf16.mxu0 0
    %882 = vmatpush1.bf16.msra.mxu0 0
    %883 = vmatprep.subr.bf16.mxu0 0
    %884 = vmatpush1.bf16.msra.mxu0 0
    %885 = vmatprep.subr.bf16.mxu0 0
    %886 = vmatpush1.bf16.msra.mxu0 0
    %887 = vmatprep.mubr.bf16.mxu0 0
    %888 = vmatmul.mubr.bf16.gmra.mrb[0].mxu0 %v758
    %v889 = vpop.f32.mrb[0].mxu0
    %v890 = vadd.f32 0.0, %v889
    %v891 = vpop.f32.mrb[0].mxu0
    %v892 = vadd.f32 0.0, %v891
    %v893 = vpop.f32.mrb[0].mxu0
    %v894 = vpop.f32.mrb[0].mxu0
    %895 = vdwg.mxu0
    %v912 = vunpack.c.l.b16 %v742
    %v913 = vunpack.c.h.b16 %v742
    %v914 = vunpack.c.l.b16 %v743
    %v915 = vunpack.c.h.b16 %v743
    %v916 = vunpack.c.l.b16 %v744
    %v917 = vunpack.c.h.b16 %v744
    %v918 = vunpack.c.l.b16 %v745
    %v919 = vunpack.c.h.b16 %v745
    %v920 = vunpack.c.l.b16 %v746
    %v921 = vunpack.c.h.b16 %v746
    %v922 = vunpack.c.l.b16 %v747
    %v923 = vunpack.c.h.b16 %v747
    %v924 = vunpack.c.l.b16 %v748
    %v925 = vunpack.c.h.b16 %v748
    %v926 = vunpack.c.l.b16 %v749
    %v927 = vunpack.c.h.b16 %v749
    %v928 = vunpack.c.l.b16 %v750
    %v929 = vunpack.c.h.b16 %v750
    %v930 = vunpack.c.l.b16 %v751
    %v931 = vunpack.c.h.b16 %v751
    %v932 = vunpack.c.l.b16 %v752
    %v933 = vunpack.c.h.b16 %v752
    %v934 = vunpack.c.l.b16 %v753
    %v935 = vunpack.c.h.b16 %v753
    %v936 = vunpack.c.l.b16 %v754
    %v937 = vunpack.c.h.b16 %v754
    %v938 = vunpack.c.l.b16 %v755
    %v939 = vunpack.c.h.b16 %v755
    %v940 = vunpack.c.l.b16 %v756
    %v941 = vunpack.c.h.b16 %v756
    %v942 = vunpack.c.l.b16 %v757
    %v943 = vunpack.c.h.b16 %v757
    %v944 = vpack.c.b16 %v914, %v912
    %v945 = vpack.c.b16 %v915, %v913
    %v946 = vpack.c.b16 %v918, %v916
    %v947 = vpack.c.b16 %v919, %v917
    %v948 = vpack.c.b16 %v922, %v920
    %v949 = vpack.c.b16 %v923, %v921
    %v950 = vpack.c.b16 %v926, %v924
    %v951 = vpack.c.b16 %v927, %v925
    %v952 = vpack.c.b16 %v930, %v928
    %v953 = vpack.c.b16 %v931, %v929
    %v954 = vpack.c.b16 %v934, %v932
    %v955 = vpack.c.b16 %v935, %v933
    %v956 = vpack.c.b16 %v938, %v936
    %v957 = vpack.c.b16 %v939, %v937
    %v958 = vpack.c.b16 %v942, %v940
    %v959 = vpack.c.b16 %v943, %v941
    %976 = vmatprep.subr.bf16.mxu0 %v945
    %977 = vmatpush1.bf16.msra.mxu0 %v944
    %978 = vmatprep.subr.bf16.mxu0 %v947
    %979 = vmatpush1.bf16.msra.mxu0 %v946
    %980 = vmatprep.subr.bf16.mxu0 %v949
    %981 = vmatpush1.bf16.msra.mxu0 %v948
    %982 = vmatprep.subr.bf16.mxu0 %v951
    %983 = vmatpush1.bf16.msra.mxu0 %v950
    %984 = vmatprep.subr.bf16.mxu0 %v953
    %985 = vmatpush1.bf16.msra.mxu0 %v952
    %986 = vmatprep.subr.bf16.mxu0 %v955
    %987 = vmatpush1.bf16.msra.mxu0 %v954
    %988 = vmatprep.subr.bf16.mxu0 %v957
    %989 = vmatpush1.bf16.msra.mxu0 %v956
    %990 = vmatprep.subr.bf16.mxu0 %v959
    %991 = vmatpush1.bf16.msra.mxu0 %v958
    %992 = vmatprep.subr.bf16.mxu0 0
    %993 = vmatpush1.bf16.msra.mxu0 0
    %994 = vmatprep.subr.bf16.mxu0 0
    %995 = vmatpush1.bf16.msra.mxu0 0
    %996 = vmatprep.subr.bf16.mxu0 0
    %997 = vmatpush1.bf16.msra.mxu0 0
    %998 = vmatprep.subr.bf16.mxu0 0
    %999 = vmatpush1.bf16.msra.mxu0 0
    %1000 = vmatprep.subr.bf16.mxu0 0
    %1001 = vmatpush1.bf16.msra.mxu0 0
    %1002 = vmatprep.subr.bf16.mxu0 0
    %1003 = vmatpush1.bf16.msra.mxu0 0
    %1004 = vmatprep.subr.bf16.mxu0 0
    %1005 = vmatpush1.bf16.msra.mxu0 0
    %1006 = vmatprep.subr.bf16.mxu0 0
    %1007 = vmatpush1.bf16.msra.mxu0 0
    %1008 = vmatprep.mubr.bf16.mxu0 0
    %1009 = vmatmul.mubr.bf16.gmra.mrb[0].mxu0 %v741
    %v1010 = vpop.f32.mrb[0].mxu0
    %v1011 = vadd.f32 %v890, %v1010
    %v1012 = vpop.f32.mrb[0].mxu0
    %v1013 = vadd.f32 %v892, %v1012
    %v1014 = vpop.f32.mrb[0].mxu0
    %v1015 = vpop.f32.mrb[0].mxu0
    %1016 = vdwg.mxu0
    %v1017 = vld [vmem:[#allocation15] sm:$0x3]
    %v1019 = vlaneseq
    %v1020 = vshrl.u32 %v1019, 7
    %v1021 = vsub.s32 0, %v1020
    %v1022 = vrot.slane %v1017, %v1021
    %v1023 = vlaneseq
    %v1024 = vshrl.u32 %v1023, 7
    %v1025 = vsub.s32 1, %v1024
    %v1026 = vrot.slane %v1017, %v1025
    %v1029 = vadd.f32 %v1011, %v1022
    %v1030 = vadd.f32 %v1013, %v1026
    %v1031 = vmax.f32 %v1029, 0.0
    %v1032 = vmax.f32 %v1030, 0.0
    %v1033 = vpack.c.bf16 %v1031, %v1031
    %v1034 = vpack.c.bf16 %v1032, %v1032
    %v1035 = vld [vmem:[%s9] sm:$0xf]
    %v1036 = vld [vmem:[%s9 + $0x4] sm:$0xf]
    %v1037 = vld [vmem:[%s9 + $0x8] sm:$0xf]
    %v1038 = vld [vmem:[%s9 + $0xc] sm:$0xf]
    %v1039 = vld [vmem:[%s9 + $0x10] sm:$0xf]
    %v1040 = vld [vmem:[%s9 + $0x14] sm:$0xf]
    %v1041 = vld [vmem:[%s9 + $0x18] sm:$0xf]
    %v1042 = vld [vmem:[%s9 + $0x1c] sm:$0xf]
    %v1043 = vld [vmem:[%s9 + $0x20] sm:$0xf]
    %v1044 = vld [vmem:[%s9 + $0x24] sm:$0xf]
    %v1045 = vld [vmem:[%s9 + $0x28] sm:$0xf]
    %v1046 = vld [vmem:[%s9 + $0x2c] sm:$0xf]
    %v1047 = vld [vmem:[%s9 + $0x30] sm:$0xf]
    %v1048 = vld [vmem:[%s9 + $0x34] sm:$0xf]
    %v1049 = vld [vmem:[%s9 + $0x38] sm:$0xf]
    %v1050 = vld [vmem:[%s9 + $0x3c] sm:$0xf]
    %v1051 = vld [vmem:[%s9 + $0x40] sm:$0xf]
    %v1052 = vld [vmem:[%s9 + $0x44] sm:$0xf]
    %v1053 = vld [vmem:[%s9 + $0x48] sm:$0xf]
    %v1054 = vld [vmem:[%s9 + $0x4c] sm:$0xf]
    %v1055 = vld [vmem:[%s9 + $0x50] sm:$0xf]
    %v1056 = vld [vmem:[%s9 + $0x54] sm:$0xf]
    %v1057 = vld [vmem:[%s9 + $0x58] sm:$0xf]
    %v1058 = vld [vmem:[%s9 + $0x5c] sm:$0xf]
    %v1059 = vld [vmem:[%s9 + $0x60] sm:$0xf]
    %v1060 = vld [vmem:[%s9 + $0x64] sm:$0xf]
    %v1061 = vld [vmem:[%s9 + $0x68] sm:$0xf]
    %v1062 = vld [vmem:[%s9 + $0x6c] sm:$0xf]
    %v1063 = vld [vmem:[%s9 + $0x70] sm:$0xf]
    %v1064 = vld [vmem:[%s9 + $0x74] sm:$0xf]
    %v1065 = vld [vmem:[%s9 + $0x78] sm:$0xf]
    %v1066 = vld [vmem:[%s9 + $0x7c] sm:$0xf]
    %v1067 = vld [vmem:[%s10] sm:$0x1]
    %v1069 = vlaneseq
    %v1070 = vshrl.u32 %v1069, 7
    %v1071 = vsub.s32 0, %v1070
    %v1072 = vrot.slane %v1067, %v1071
    %v1106 = vunpack.c.l.b16 %v1035
    %v1107 = vunpack.c.l.b16 %v1036
    %v1108 = vunpack.c.l.b16 %v1037
    %v1109 = vunpack.c.l.b16 %v1038
    %v1110 = vunpack.c.l.b16 %v1039
    %v1111 = vunpack.c.l.b16 %v1040
    %v1112 = vunpack.c.l.b16 %v1041
    %v1113 = vunpack.c.l.b16 %v1042
    %v1114 = vunpack.c.l.b16 %v1043
    %v1115 = vunpack.c.l.b16 %v1044
    %v1116 = vunpack.c.l.b16 %v1045
    %v1117 = vunpack.c.l.b16 %v1046
    %v1118 = vunpack.c.l.b16 %v1047
    %v1119 = vunpack.c.l.b16 %v1048
    %v1120 = vunpack.c.l.b16 %v1049
    %v1121 = vunpack.c.l.b16 %v1050
    %v1122 = vunpack.c.l.b16 %v1051
    %v1123 = vunpack.c.l.b16 %v1052
    %v1124 = vunpack.c.l.b16 %v1053
    %v1125 = vunpack.c.l.b16 %v1054
    %v1126 = vunpack.c.l.b16 %v1055
    %v1127 = vunpack.c.l.b16 %v1056
    %v1128 = vunpack.c.l.b16 %v1057
    %v1129 = vunpack.c.l.b16 %v1058
    %v1130 = vunpack.c.l.b16 %v1059
    %v1131 = vunpack.c.l.b16 %v1060
    %v1132 = vunpack.c.l.b16 %v1061
    %v1133 = vunpack.c.l.b16 %v1062
    %v1134 = vunpack.c.l.b16 %v1063
    %v1135 = vunpack.c.l.b16 %v1064
    %v1136 = vunpack.c.l.b16 %v1065
    %v1137 = vunpack.c.l.b16 %v1066
    %v1138 = vpack.c.b16 %v1107, %v1106
    %v1139 = vpack.c.b16 %v1109, %v1108
    %v1140 = vpack.c.b16 %v1111, %v1110
    %v1141 = vpack.c.b16 %v1113, %v1112
    %v1142 = vpack.c.b16 %v1115, %v1114
    %v1143 = vpack.c.b16 %v1117, %v1116
    %v1144 = vpack.c.b16 %v1119, %v1118
    %v1145 = vpack.c.b16 %v1121, %v1120
    %v1146 = vpack.c.b16 %v1123, %v1122
    %v1147 = vpack.c.b16 %v1125, %v1124
    %v1148 = vpack.c.b16 %v1127, %v1126
    %v1149 = vpack.c.b16 %v1129, %v1128
    %v1150 = vpack.c.b16 %v1131, %v1130
    %v1151 = vpack.c.b16 %v1133, %v1132
    %v1152 = vpack.c.b16 %v1135, %v1134
    %v1153 = vpack.c.b16 %v1137, %v1136
    %1170 = vmatprep.subr.bf16.mxu0 0
    %1171 = vmatpush1.bf16.msra.mxu0 %v1138
    %1172 = vmatprep.subr.bf16.mxu0 0
    %1173 = vmatpush1.bf16.msra.mxu0 %v1139
    %1174 = vmatprep.subr.bf16.mxu0 0
    %1175 = vmatpush1.bf16.msra.mxu0 %v1140
    %1176 = vmatprep.subr.bf16.mxu0 0
    %1177 = vmatpush1.bf16.msra.mxu0 %v1141
    %1178 = vmatprep.subr.bf16.mxu0 0
    %1179 = vmatpush1.bf16.msra.mxu0 %v1142
    %1180 = vmatprep.subr.bf16.mxu0 0
    %1181 = vmatpush1.bf16.msra.mxu0 %v1143
    %1182 = vmatprep.subr.bf16.mxu0 0
    %1183 = vmatpush1.bf16.msra.mxu0 %v1144
    %1184 = vmatprep.subr.bf16.mxu0 0
    %1185 = vmatpush1.bf16.msra.mxu0 %v1145
    %1186 = vmatprep.subr.bf16.mxu0 0
    %1187 = vmatpush1.bf16.msra.mxu0 %v1146
    %1188 = vmatprep.subr.bf16.mxu0 0
    %1189 = vmatpush1.bf16.msra.mxu0 %v1147
    %1190 = vmatprep.subr.bf16.mxu0 0
    %1191 = vmatpush1.bf16.msra.mxu0 %v1148
    %1192 = vmatprep.subr.bf16.mxu0 0
    %1193 = vmatpush1.bf16.msra.mxu0 %v1149
    %1194 = vmatprep.subr.bf16.mxu0 0
    %1195 = vmatpush1.bf16.msra.mxu0 %v1150
    %1196 = vmatprep.subr.bf16.mxu0 0
    %1197 = vmatpush1.bf16.msra.mxu0 %v1151
    %1198 = vmatprep.subr.bf16.mxu0 0
    %1199 = vmatpush1.bf16.msra.mxu0 %v1152
    %1200 = vmatprep.subr.bf16.mxu0 0
    %1201 = vmatpush1.bf16.msra.mxu0 %v1153
    %1202 = vmatprep.mubr.bf16.mxu0 %v1034
    %1203 = vmatmul.mubr.bf16.gmra.mrb[0].mxu0 %v1033
    %v1204 = vpop.f32.mrb[0].mxu0
    %v1205 = vadd.f32 %v1072, %v1204
    %v1206 = vpop.f32.mrb[0].mxu0
    %v1207 = vpop.f32.mrb[0].mxu0
    %v1208 = vpop.f32.mrb[0].mxu0
    %1209 = vdwg.mxu0
    %v1210 = vmax.f32 %v1205, 0.0
    %v1211 = vpack.c.bf16 %v1210, %v1210
    %v1212 = vld [vmem:[%s11] sm:$0xf]
    %v1213 = vld [vmem:[%s11 + $0x4] sm:$0xf]
    %v1214 = vld [vmem:[%s11 + $0x8] sm:$0xf]
    %v1215 = vld [vmem:[%s11 + $0xc] sm:$0xf]
    %v1216 = vld [vmem:[%s11 + $0x10] sm:$0xf]
    %v1217 = vld [vmem:[%s11 + $0x14] sm:$0xf]
    %v1218 = vld [vmem:[%s11 + $0x18] sm:$0xf]
    %v1219 = vld [vmem:[%s11 + $0x1c] sm:$0xf]
    %v1220 = vld [vmem:[%s11 + $0x20] sm:$0xf]
    %v1221 = vld [vmem:[%s11 + $0x24] sm:$0xf]
    %v1222 = vld [vmem:[%s11 + $0x28] sm:$0xf]
    %v1223 = vld [vmem:[%s11 + $0x2c] sm:$0xf]
    %v1224 = vld [vmem:[%s11 + $0x30] sm:$0xf]
    %v1225 = vld [vmem:[%s11 + $0x34] sm:$0xf]
    %v1226 = vld [vmem:[%s11 + $0x38] sm:$0xf]
    %v1227 = vld [vmem:[%s11 + $0x3c] sm:$0xf]
    %v1228 = vld [vmem:[%s12] sm:$0x1]
    %v1230 = vlaneseq
    %v1231 = vshrl.u32 %v1230, 7
    %v1232 = vsub.s32 0, %v1231
    %v1233 = vrot.slane %v1228, %v1232
    %v1251 = vunpack.c.l.b16 %v1212
    %v1252 = vunpack.c.l.b16 %v1213
    %v1253 = vunpack.c.l.b16 %v1214
    %v1254 = vunpack.c.l.b16 %v1215
    %v1255 = vunpack.c.l.b16 %v1216
    %v1256 = vunpack.c.l.b16 %v1217
    %v1257 = vunpack.c.l.b16 %v1218
    %v1258 = vunpack.c.l.b16 %v1219
    %v1259 = vunpack.c.l.b16 %v1220
    %v1260 = vunpack.c.l.b16 %v1221
    %v1261 = vunpack.c.l.b16 %v1222
    %v1262 = vunpack.c.l.b16 %v1223
    %v1263 = vunpack.c.l.b16 %v1224
    %v1264 = vunpack.c.l.b16 %v1225
    %v1265 = vunpack.c.l.b16 %v1226
    %v1266 = vunpack.c.l.b16 %v1227
    %v1267 = vpack.c.b16 %v1252, %v1251
    %v1268 = vpack.c.b16 %v1254, %v1253
    %v1269 = vpack.c.b16 %v1256, %v1255
    %v1270 = vpack.c.b16 %v1258, %v1257
    %v1271 = vpack.c.b16 %v1260, %v1259
    %v1272 = vpack.c.b16 %v1262, %v1261
    %v1273 = vpack.c.b16 %v1264, %v1263
    %v1274 = vpack.c.b16 %v1266, %v1265
    %1283 = vmatprep.subr.bf16.mxu0 0
    %1284 = vmatpush1.bf16.msra.mxu0 %v1267
    %1285 = vmatprep.subr.bf16.mxu0 0
    %1286 = vmatpush1.bf16.msra.mxu0 %v1268
    %1287 = vmatprep.subr.bf16.mxu0 0
    %1288 = vmatpush1.bf16.msra.mxu0 %v1269
    %1289 = vmatprep.subr.bf16.mxu0 0
    %1290 = vmatpush1.bf16.msra.mxu0 %v1270
    %1291 = vmatprep.subr.bf16.mxu0 0
    %1292 = vmatpush1.bf16.msra.mxu0 %v1271
    %1293 = vmatprep.subr.bf16.mxu0 0
    %1294 = vmatpush1.bf16.msra.mxu0 %v1272
    %1295 = vmatprep.subr.bf16.mxu0 0
    %1296 = vmatpush1.bf16.msra.mxu0 %v1273
    %1297 = vmatprep.subr.bf16.mxu0 0
    %1298 = vmatpush1.bf16.msra.mxu0 %v1274
    %1299 = vmatprep.subr.bf16.mxu0 0
    %1300 = vmatpush1.bf16.msra.mxu0 0
    %1301 = vmatprep.subr.bf16.mxu0 0
    %1302 = vmatpush1.bf16.msra.mxu0 0
    %1303 = vmatprep.subr.bf16.mxu0 0
    %1304 = vmatpush1.bf16.msra.mxu0 0
    %1305 = vmatprep.subr.bf16.mxu0 0
    %1306 = vmatpush1.bf16.msra.mxu0 0
    %1307 = vmatprep.subr.bf16.mxu0 0
    %1308 = vmatpush1.bf16.msra.mxu0 0
    %1309 = vmatprep.subr.bf16.mxu0 0
    %1310 = vmatpush1.bf16.msra.mxu0 0
    %1311 = vmatprep.subr.bf16.mxu0 0
    %1312 = vmatpush1.bf16.msra.mxu0 0
    %1313 = vmatprep.subr.bf16.mxu0 0
    %1314 = vmatpush1.bf16.msra.mxu0 0
    %1315 = vmatprep.mubr.bf16.mxu0 0
    %1316 = vmatmul.mubr.bf16.gmra.mrb[0].mxu0 %v1211
    %v1317 = vpop.f32.mrb[0].mxu0
    %v1318 = vadd.f32 %v1233, %v1317
    %v1319 = vpop.f32.mrb[0].mxu0
    %v1320 = vpop.f32.mrb[0].mxu0
    %v1321 = vpop.f32.mrb[0].mxu0
    %1322 = vdwg.mxu0
    %v1323 = vmax.f32 %v1318, 0.0
    %v1324 = vld [vmem:[%s13] sm:$0xf]
    %v1325 = vpack.c.bf16 %v1323, %v1323
    %v1326 = vld [vmem:[#allocation2] sm:$0x1]
    %v1328 = vlaneseq
    %v1329 = vshrl.u32 %v1328, 7
    %v1330 = vsub.s32 0, %v1329
    %v1331 = vrot.slane %v1326, %v1330
    %1332 = vset.pattern.permute.xlu0 0
    %1333 = vperm.xlu0 %1332, %v1331
    %v1334 = vpop.permute.xlu0 %1333
    %vm1336 = vcmask 523264
    %v1338 = vsel %vm1336, %v1324, 0
    %v1341 = vsel %vm1336, %v1325, 0
    %1343 = vmatprep.subr.bf16.mxu0 0
    %1344 = vmatpush1.bf16.xpose.msra.mxu0 %v1341
    %1345 = vmatprep.subr.bf16.mxu0 0
    %1346 = vmatpush1.bf16.xpose.msra.mxu0 0
    %1347 = vmatprep.subr.bf16.mxu0 0
    %1348 = vmatpush1.bf16.xpose.msra.mxu0 0
    %1349 = vmatprep.subr.bf16.mxu0 0
    %1350 = vmatpush1.bf16.xpose.msra.mxu0 0
    %1351 = vmatprep.subr.bf16.mxu0 0
    %1352 = vmatpush1.bf16.xpose.msra.mxu0 0
    %1353 = vmatprep.subr.bf16.mxu0 0
    %1354 = vmatpush1.bf16.xpose.msra.mxu0 0
    %1355 = vmatprep.subr.bf16.mxu0 0
    %1356 = vmatpush1.bf16.xpose.msra.mxu0 0
    %1357 = vmatprep.subr.bf16.mxu0 0
    %1358 = vmatpush1.bf16.xpose.msra.mxu0 0
    %1359 = vmatprep.subr.bf16.mxu0 0
    %1360 = vmatpush1.bf16.xpose.msra.mxu0 0
    %1361 = vmatprep.subr.bf16.mxu0 0
    %1362 = vmatpush1.bf16.xpose.msra.mxu0 0
    %1363 = vmatprep.subr.bf16.mxu0 0
    %1364 = vmatpush1.bf16.xpose.msra.mxu0 0
    %1365 = vmatprep.subr.bf16.mxu0 0
    %1366 = vmatpush1.bf16.xpose.msra.mxu0 0
    %1367 = vmatprep.subr.bf16.mxu0 0
    %1368 = vmatpush1.bf16.xpose.msra.mxu0 0
    %1369 = vmatprep.subr.bf16.mxu0 0
    %1370 = vmatpush1.bf16.xpose.msra.mxu0 0
    %1371 = vmatprep.subr.bf16.mxu0 0
    %1372 = vmatpush1.bf16.xpose.msra.mxu0 0
    %1373 = vmatprep.subr.bf16.mxu0 0
    %1374 = vmatpush1.bf16.xpose.msra.mxu0 0
    %1375 = vmatprep.mubr.bf16.mxu0 0
    %1376 = vmatmul.mubr.bf16.gmra.mrb[0].mxu0 %v1338
    %v1377 = vpop.f32.mrb[0].mxu0
    %v1378 = vadd.f32 %v1334, %v1377
    %v1379 = vpop.f32.mrb[0].mxu0
    %v1380 = vpop.f32.mrb[0].mxu0
    %v1381 = vpop.f32.mrb[0].mxu0
    %1382 = vdwg.mxu0
    %vm1383 = vcmask 64512
    %1384 = vst.msk [vmem:[#allocation17] sm:$0xff] %vm1383, %v1378
    // Predicated region
    $region94: #{tpu_custom_call.1} parent=1 // pred_check
      _
    $region95: #{tpu_custom_call.1} parent=1 // pred_check_branch
      %1386 = sbr.rel (0) target = $region97
    $region96: #{tpu_custom_call.1} parent=1 // pred_region
      %s1388 = ssub.s32 128, 128
      %1389 = vsyncadd [#allocation5], %s1388
      %s1391 = sshll.u32 [#allocation17], 4
      %s1392 = int_to_ptr.vmem [resolvable:$true] %s1391
      %1394 = dma.vmem_to_hbm [thread:$0]  %s1392, 128, %s15, [#allocation5]
    $region97: #{tpu_custom_call.1} parent=1 // pred_fallthru
      _
    // Predicated region
    $region98: #{tpu_custom_call.1} parent=1 // pred_check
      _
    $region99: #{tpu_custom_call.1} parent=1 // pred_check_branch
      %1396 = sbr.rel (0) target = $region101
    $region100: #{tpu_custom_call.1} parent=1 // pred_region
      %1397 = dma.done [#allocation5], 128
    $region101: #{tpu_custom_call.1} parent=1 // pred_fallthru
      _
    %1398 = vsyncpa [#allocation4], 1
    %1399 = vsyncpa [#allocation7], 1
    %1400 = vsyncpa [#allocation10], 1
    %1401 = vsyncpa [#allocation13], 1
    %1402 = vsyncpa [#allocation16], 1
    %1403 = vsyncpa [#allocation5], 1

</llo_original>
